<compile_context>
chip_gen: v5e
topology: v5e:2x2
jax: 0.10.0
libtpu: 0.0.40
codegen_flags: <defaults>
</compile_context>

<pallas_src>
import jax
import jax.numpy as jnp
import numpy as np
from jax.experimental import pallas as pl
from jax.experimental.pallas import tpu as pltpu


def _ceil8(v):
    return ((v + 7) // 8) * 8


# ------------------------------ fused kernel -------------------------------

def _make_policy_kernel(conv_meta, n_fc, rows_last, hq_f, bblk):
    n_conv = len(conv_meta)
    assert n_conv >= 1  # TODO(synk): conv-free configs are not supported here.

    def kernel(*refs):
        f32, bf16 = jnp.float32, jnp.bfloat16
        x_ref = refs[0]
        o_ref = refs[-1]
        idx = 1

        act2d = x_ref[...]                       # (B*rows0, L0), bf16
        act3d = None

        # ---- conv -> maxpool(2) -> relu stack ----
        for li in range(n_conv):
            m = conv_meta[li]
            wcat = refs[idx]
            idx += 1                             # (L_in, k*ncol), bf16
            k, hc, ncol, cout = m["k"], m["hc"], m["ncol"], m["cout"]
            rows_in, rows_out, pad_next = m["rows_in"], m["rows_out"], m["pad_next"]
            hq = hc // 2

            if li > 0:
                # rows_in % 8 == 0 -> layout-free collapse; cast once for MXU.
                act2d = act3d.reshape(bblk * rows_in, m["l_in"]).astype(bf16)

            # Single banded matmul per layer; the batch rides along M.
            y2 = jnp.dot(act2d, wcat[...], preferred_element_type=f32)
            y3 = y2.reshape(bblk, rows_in, k * ncol)

            # Accumulate the k kernel-row bands (sublane shift dy, lane block dy)
            # with static slices + VPU adds (no selector matmuls).
            acc = y3[:, 0:hc, 0:ncol]
            for dy in range(1, k):
                acc = acc + y3[:, dy:dy + hc, dy * ncol:(dy + 1) * ncol]

            # 2x2 max-pool (stride 2, floor) + ReLU.
            # Row pairs: static slices + max; the next layer's zero rows for
            # spatial padding and the round-to-8 filler rows are concatenated
            # in the same pass.
            pieces = []
            if pad_next > 0:
                pieces.append(jnp.zeros((bblk, pad_next, ncol), f32))
            for j in range(hq):
                pieces.append(jnp.maximum(acc[:, 2 * j:2 * j + 1, :],
                                          acc[:, 2 * j + 1:2 * j + 2, :]))
            tail = rows_out - hq - pad_next
            if tail > 0:
                pieces.append(jnp.zeros((bblk, tail, ncol), f32))
            stk = jnp.concatenate(pieces, axis=1)       # (B, rows_out, ncol)

            # Column pairs: shifted lane slice + max.  Valid pooled columns sit
            # at even x; the stride-2 selection and next-layer x-padding are
            # folded into the next banded weight matrix / FC1 permutation.
            act3d = jnp.maximum(
                jnp.maximum(stk[:, :, :ncol - cout], stk[:, :, cout:]), 0.0)

        # ---- flatten (torch NCHW order folded into the FC1 weight) ----
        selmat = refs[idx]
        idx += 1                                  # (hq_f, B, B*rows_last) bf16
        l_f = conv_meta[-1]["ncol"] - conv_meta[-1]["cout"]
        q = act3d.reshape(bblk * rows_last, l_f).astype(jnp.bfloat16)
        xs = [jnp.dot(selmat[r], q, preferred_element_type=jnp.float32)
              for r in range(hq_f)]               # tiny 0/1 row-pick matmuls
        h = jnp.concatenate(xs, axis=1)           # (B, hq_f*l_f), f32

        # ---- fully connected stack ----
        for j in range(n_fc):
            w = refs[idx]
            b = refs[idx + 1]
            idx += 2
            z = jnp.dot(h.astype(jnp.bfloat16), w[...],
                        preferred_element_type=jnp.float32) + b[...]
            if j == n_fc - 1:
                z = z - jnp.max(z, axis=-1, keepdims=True)
                e = jnp.exp(z)
                s = jnp.sum(e, axis=-1, keepdims=True)
                inv = pl.reciprocal(s, approx=True)   # EUP
                inv = inv * (2.0 - s * inv)           # single Newton step
                o_ref[...] = e * inv
            else:
                h = jnp.maximum(z, 0.0)

    return kernel


# --------------------------- parameter packaging ----------------------------

def init_params(key, cnn_layers, nn_layers):
    """Raw parameters (torch-like semantics).

    Conv weights stored as (k, k, Cin, Cout); FC weights as (in, out).
    (Real PyTorch weights: conv w[dy,dx,ci,co] == torch_w[co,ci,dy,dx],
    fc w[in,out] == torch_w.T.)
    """
    params = {"conv": [], "fc": []}
    for (in_ch, out_ch, k, _stride, _pad) in cnn_layers:
        # NOTE: the PyTorch module drops `stride` when building Conv2d -> stride 1.
        key, sub = jax.random.split(key)
        w = jax.random.normal(sub, (k, k, in_ch, out_ch), jnp.float32) * 0.1
        params["conv"].append(w)
    for (in_size, out_size) in nn_layers:
        key, kw, kb = jax.random.split(key, 3)
        w = jax.random.normal(kw, (in_size, out_size), jnp.float32)
        w = w * (1.0 / jnp.sqrt(jnp.float32(in_size)))
        b = jax.random.normal(kb, (1, out_size), jnp.float32) * 0.01
        params["fc"].append((w, b))
    return params


def pack_params(params, cnn_layers, nn_layers, in_hw, block_batch=8):
    """Build the constant operands (all weights bf16) and static metadata."""
    n_conv = len(cnn_layers)
    n_fc = len(nn_layers)

    h_in, w_in = in_hw          # unpadded spatial input of the current conv
    w_raw = w_in                # physical lane columns (x positions) present
    sx = 1                      # lane stride between valid x positions
    rows_in = _ceil8(h_in + 2 * cnn_layers[0][4])

    conv_meta = []
    operands = []
    for i, (cin, cout, k, _stride, pad) in enumerate(cnn_layers):
        wt = np.asarray(params["conv"][i], dtype=np.float32)   # (k, k, cin, cout)
        hp = h_in + 2 * pad
        hc = hp - k + 1
        wc = w_in + 2 * pad - k + 1
        hq, wq = hc // 2, wc // 2
        ncol = wc * cout
        l_in = w_raw * cin
        pad_next = cnn_layers[i + 1][4] if i + 1 < n_conv else 0
        rows_out = _ceil8(hq + 2 * pad_next)

        # Lane-concatenated banded weights: input lane = x_raw*cin + ci,
        # output lane (block dy) = xo*cout + co.  x-padding and the stride-2
        # (pooled) input column pattern are folded in as zero rows.
        wcat = np.zeros((l_in, k * ncol), np.float32)
        for dy in range(k):
            for xo in range(wc):
                for dx in range(k):
                    x = xo + dx - pad
                    if 0 <= x < w_in:
                        r0 = sx * x * cin
                        c0 = dy * ncol + xo * cout
                        wcat[r0:r0 + cin, c0:c0 + cout] += wt[dy, dx]
        operands.append(jnp.asarray(wcat, jnp.bfloat16))
        conv_meta.append(dict(k=k, hc=hc, ncol=ncol, cout=cout, l_in=l_in,
                              rows_in=rows_in, rows_out=rows_out,
                              pad_next=pad_next))

        # geometry of the next layer's input
        h_in, w_in = hq, wq
        w_raw = wc - 1
        sx = 2
        rows_in = rows_out

    # ---- flatten + fully-connected ----
    c_f = cnn_layers[-1][1]
    hf, wf = h_in, w_in
    l_f = conv_meta[-1]["ncol"] - conv_meta[-1]["cout"]
    rows_last = conv_meta[-1]["rows_out"]
    assert nn_layers[0][0] == c_f * hf * wf, (nn_layers[0][0], c_f, hf, wf)

    # Tiny 0/1 row-pick matrices (exact in bf16): sel[r] @ Q extracts pooled
    # feature row r of every sample in the block.
    sel = np.zeros((hf, block_batch, block_batch * rows_last), np.float32)
    for r in range(hf):
        for b in range(block_batch):
            sel[r, b, b * rows_last + r] = 1.0
    operands.append(jnp.asarray(sel, jnp.bfloat16))

    for j, (wfc, bfc) in enumerate(params["fc"]):           # wfc: (in, out)
        wnp = np.asarray(wfc, dtype=np.float32)
        bnp = np.asarray(bfc, dtype=np.float32).reshape(1, -1)
        if j == 0:
            # Kernel flatten layout: index = r*l_f + 2*x*c_f + c  (valid pooled
            # columns sit at even x).  Torch flatten order is (c, y, x).
            out0 = wnp.shape[1]
            w1p = np.zeros((hf * l_f, out0), np.float32)
            for r in range(hf):
                for x in range(wf):
                    for c in range(c_f):
                        w1p[r * l_f + 2 * x * c_f + c, :] = \
                            wnp[c * hf * wf + r * wf + x, :]
            operands.append(jnp.asarray(w1p, jnp.bfloat16))
        else:
            operands.append(jnp.asarray(wnp, jnp.bfloat16))
        operands.append(jnp.asarray(bnp, jnp.float32))

    meta = dict(conv=conv_meta, n_fc=n_fc, n_out=nn_layers[-1][1],
                rows0=conv_meta[0]["rows_in"], l0=conv_meta[0]["l_in"],
                pad0=cnn_layers[0][4], hq_f=hf, rows_last=rows_last,
                bblk=block_batch)
    return operands, meta


# --------------------------------- forward ----------------------------------

def policy_forward(packed, x_nchw):
    operands, meta = packed
    bblk = meta["bblk"]
    rows0, l0, pad0 = meta["rows0"], meta["l0"], meta["pad0"]
    n_out = meta["n_out"]

    n, c, h, w = x_nchw.shape
    n_pad = ((n + bblk - 1) // bblk) * bblk

    # NCHW -> (N_pad*rows0, W*C) bf16: channel-minor lanes, y-padding + the
    # round-to-8 filler rows added physically (x-padding lives in the weights).
    x = jnp.transpose(x_nchw, (0, 2, 3, 1)).reshape(n, h, w * c)
    x = jnp.pad(x, ((0, n_pad - n), (pad0, rows0 - h - pad0), (0, 0)))
    x = x.astype(jnp.bfloat16).reshape(n_pad * rows0, w * c)

    kernel = _make_policy_kernel(meta["conv"], meta["n_fc"],
                                 meta["rows_last"], meta["hq_f"], bblk)

    in_specs = [pl.BlockSpec((bblk * rows0, l0), lambda i: (i, 0))]
    for a in operands:
        in_specs.append(pl.BlockSpec(a.shape, lambda i, _nd=a.ndim: (0,) * _nd))

    out = pl.pallas_call(
        kernel,
        grid=(n_pad // bblk,),
        in_specs=in_specs,
        out_specs=pl.BlockSpec((bblk, n_out), lambda i: (i, 0)),
        out_shape=jax.ShapeDtypeStruct((n_pad, n_out), jnp.float32),
        compiler_params=pltpu.CompilerParams(
            dimension_semantics=("parallel",)),
    )(x, *operands)
    return out[:n]


# ----------------------------------- main ------------------------------------

if __name__ == "__main__":
    # Module config: two conv layers, two fc layers.
    cnn_layers = [(4, 8, 3, 1, 1), (8, 16, 3, 1, 1)]
    # conv1+pool: (8, 8, 8); conv2+pool: (16, 4, 4) -> n_in = 256.
    nn_layers = [(256, 32), (32, 4)]
    in_hw = (16, 16)

    key = jax.random.PRNGKey(0)
    key, xkey = jax.random.split(key)
    x = jax.random.normal(xkey, (2, 4, 16, 16), jnp.float32)   # NCHW, like PyTorch

    params = init_params(key, cnn_layers, nn_layers)
    packed = pack_params(params, cnn_layers, nn_layers, in_hw, block_batch=8)

    forward = jax.jit(lambda xin: policy_forward(packed, xin))
    out = jax.block_until_ready(forward(x))

    assert out.shape == (2, 4), out.shape
    assert bool(jnp.all(out >= 0.0))
    assert bool(jnp.allclose(jnp.sum(out, axis=1), 1.0, atol=1e-3))
    print("KERNEL_OK")
</pallas_src>

<mosaic_0001>
module attributes {stable_mosaic.version = 11 : i64} {
  func.func @kernel(%arg0: i32, %arg1: memref<192x64xbf16, #tpu.memory_space<vmem>>, %arg2: memref<64x384xbf16, #tpu.memory_space<vmem>>, %arg3: memref<120x384xbf16, #tpu.memory_space<vmem>>, %arg4: memref<4x8x64xbf16, #tpu.memory_space<vmem>>, %arg5: memref<448x32xbf16, #tpu.memory_space<vmem>>, %arg6: memref<1x32xf32, #tpu.memory_space<vmem>>, %arg7: memref<32x4xbf16, #tpu.memory_space<vmem>>, %arg8: memref<1x4xf32, #tpu.memory_space<vmem>>, %arg9: memref<8x4xf32, #tpu.memory_space<vmem>>) attributes {dimension_semantics = [#tpu.dimension_semantics<parallel>], iteration_bounds = array<i64: 1>, scalar_prefetch = 0 : i64, scratch_operands = 0 : i64, tpu.core_type = #tpu.core_type<tc>, window_params = [{transform_indices = @transform_0, window_bounds = array<i64: 192, 64>}, {pipeline_mode = #tpu.pipeline_mode<synchronous>, transform_indices = @transform_1, window_bounds = array<i64: 64, 384>}, {pipeline_mode = #tpu.pipeline_mode<synchronous>, transform_indices = @transform_2, window_bounds = array<i64: 120, 384>}, {pipeline_mode = #tpu.pipeline_mode<synchronous>, transform_indices = @transform_3, window_bounds = array<i64: 4, 8, 64>}, {pipeline_mode = #tpu.pipeline_mode<synchronous>, transform_indices = @transform_4, window_bounds = array<i64: 448, 32>}, {pipeline_mode = #tpu.pipeline_mode<synchronous>, transform_indices = @transform_5, window_bounds = array<i64: 1, 32>}, {pipeline_mode = #tpu.pipeline_mode<synchronous>, transform_indices = @transform_6, window_bounds = array<i64: 32, 4>}, {pipeline_mode = #tpu.pipeline_mode<synchronous>, transform_indices = @transform_7, window_bounds = array<i64: 1, 4>}, {transform_indices = @transform_8, window_bounds = array<i64: 8, 4>}]} {
    %c0 = arith.constant 0 : index
    %c0_0 = arith.constant 0 : index
    %0 = vector.load %arg1[%c0, %c0_0] : memref<192x64xbf16, #tpu.memory_space<vmem>>, vector<192x64xbf16>
    %c0_1 = arith.constant 0 : index
    %c0_2 = arith.constant 0 : index
    %1 = vector.load %arg2[%c0_1, %c0_2] : memref<64x384xbf16, #tpu.memory_space<vmem>>, vector<64x384xbf16>
    %cst = arith.constant dense<0.000000e+00> : vector<192x384xf32>
    %2 = tpu.matmul %0, %1, %cst {dimension_numbers = #tpu.dot_dimension_numbers<[1], [0], [0], [1], [0, 0, 1, 1], [], []>} : vector<192x64xbf16>, vector<64x384xbf16>, vector<192x384xf32> -> vector<192x384xf32>
    %3 = vector.shape_cast %2 : vector<192x384xf32> to vector<8x24x384xf32>
    %4 = vector.extract_strided_slice %3 {offsets = [0, 0, 0], sizes = [8, 16, 128], strides = [1, 1, 1]} : vector<8x24x384xf32> to vector<8x16x128xf32>
    %5 = vector.extract_strided_slice %3 {offsets = [0, 1, 128], sizes = [8, 16, 128], strides = [1, 1, 1]} : vector<8x24x384xf32> to vector<8x16x128xf32>
    %6 = arith.addf %4, %5 : vector<8x16x128xf32>
    %7 = vector.extract_strided_slice %3 {offsets = [0, 2, 256], sizes = [8, 16, 128], strides = [1, 1, 1]} : vector<8x24x384xf32> to vector<8x16x128xf32>
    %8 = arith.addf %6, %7 : vector<8x16x128xf32>
    %cst_3 = arith.constant 0.000000e+00 : f32
    %9 = vector.broadcast %cst_3 : f32 to vector<8x1x128xf32>
    %10 = vector.extract_strided_slice %8 {offsets = [0, 0, 0], sizes = [8, 1, 128], strides = [1, 1, 1]} : vector<8x16x128xf32> to vector<8x1x128xf32>
    %11 = vector.extract_strided_slice %8 {offsets = [0, 1, 0], sizes = [8, 1, 128], strides = [1, 1, 1]} : vector<8x16x128xf32> to vector<8x1x128xf32>
    %12 = arith.maximumf %10, %11 : vector<8x1x128xf32>
    %13 = vector.extract_strided_slice %8 {offsets = [0, 2, 0], sizes = [8, 1, 128], strides = [1, 1, 1]} : vector<8x16x128xf32> to vector<8x1x128xf32>
    %14 = vector.extract_strided_slice %8 {offsets = [0, 3, 0], sizes = [8, 1, 128], strides = [1, 1, 1]} : vector<8x16x128xf32> to vector<8x1x128xf32>
    %15 = arith.maximumf %13, %14 : vector<8x1x128xf32>
    %16 = vector.extract_strided_slice %8 {offsets = [0, 4, 0], sizes = [8, 1, 128], strides = [1, 1, 1]} : vector<8x16x128xf32> to vector<8x1x128xf32>
    %17 = vector.extract_strided_slice %8 {offsets = [0, 5, 0], sizes = [8, 1, 128], strides = [1, 1, 1]} : vector<8x16x128xf32> to vector<8x1x128xf32>
    %18 = arith.maximumf %16, %17 : vector<8x1x128xf32>
    %19 = vector.extract_strided_slice %8 {offsets = [0, 6, 0], sizes = [8, 1, 128], strides = [1, 1, 1]} : vector<8x16x128xf32> to vector<8x1x128xf32>
    %20 = vector.extract_strided_slice %8 {offsets = [0, 7, 0], sizes = [8, 1, 128], strides = [1, 1, 1]} : vector<8x16x128xf32> to vector<8x1x128xf32>
    %21 = arith.maximumf %19, %20 : vector<8x1x128xf32>
    %22 = vector.extract_strided_slice %8 {offsets = [0, 8, 0], sizes = [8, 1, 128], strides = [1, 1, 1]} : vector<8x16x128xf32> to vector<8x1x128xf32>
    %23 = vector.extract_strided_slice %8 {offsets = [0, 9, 0], sizes = [8, 1, 128], strides = [1, 1, 1]} : vector<8x16x128xf32> to vector<8x1x128xf32>
    %24 = arith.maximumf %22, %23 : vector<8x1x128xf32>
    %25 = vector.extract_strided_slice %8 {offsets = [0, 10, 0], sizes = [8, 1, 128], strides = [1, 1, 1]} : vector<8x16x128xf32> to vector<8x1x128xf32>
    %26 = vector.extract_strided_slice %8 {offsets = [0, 11, 0], sizes = [8, 1, 128], strides = [1, 1, 1]} : vector<8x16x128xf32> to vector<8x1x128xf32>
    %27 = arith.maximumf %25, %26 : vector<8x1x128xf32>
    %28 = vector.extract_strided_slice %8 {offsets = [0, 12, 0], sizes = [8, 1, 128], strides = [1, 1, 1]} : vector<8x16x128xf32> to vector<8x1x128xf32>
    %29 = vector.extract_strided_slice %8 {offsets = [0, 13, 0], sizes = [8, 1, 128], strides = [1, 1, 1]} : vector<8x16x128xf32> to vector<8x1x128xf32>
    %30 = arith.maximumf %28, %29 : vector<8x1x128xf32>
    %31 = vector.extract_strided_slice %8 {offsets = [0, 14, 0], sizes = [8, 1, 128], strides = [1, 1, 1]} : vector<8x16x128xf32> to vector<8x1x128xf32>
    %32 = vector.extract_strided_slice %8 {offsets = [0, 15, 0], sizes = [8, 1, 128], strides = [1, 1, 1]} : vector<8x16x128xf32> to vector<8x1x128xf32>
    %33 = arith.maximumf %31, %32 : vector<8x1x128xf32>
    %cst_4 = arith.constant 0.000000e+00 : f32
    %34 = vector.broadcast %cst_4 : f32 to vector<8x7x128xf32>
    %35 = tpu.concatenate %9, %12, %15, %18, %21, %24, %27, %30, %33, %34 in 1 : vector<8x1x128xf32>, vector<8x1x128xf32>, vector<8x1x128xf32>, vector<8x1x128xf32>, vector<8x1x128xf32>, vector<8x1x128xf32>, vector<8x1x128xf32>, vector<8x1x128xf32>, vector<8x1x128xf32>, vector<8x7x128xf32> -> vector<8x16x128xf32>
    %36 = vector.extract_strided_slice %35 {offsets = [0, 0, 0], sizes = [8, 16, 120], strides = [1, 1, 1]} : vector<8x16x128xf32> to vector<8x16x120xf32>
    %37 = vector.extract_strided_slice %35 {offsets = [0, 0, 8], sizes = [8, 16, 120], strides = [1, 1, 1]} : vector<8x16x128xf32> to vector<8x16x120xf32>
    %38 = arith.maximumf %36, %37 : vector<8x16x120xf32>
    %cst_5 = arith.constant 0.000000e+00 : f32
    %39 = vector.broadcast %cst_5 : f32 to vector<8x16x120xf32>
    %40 = arith.maximumf %38, %39 : vector<8x16x120xf32>
    %41 = vector.shape_cast %40 : vector<8x16x120xf32> to vector<128x120xf32>
    %42 = arith.truncf %41 : vector<128x120xf32> to vector<128x120xbf16>
    %c0_6 = arith.constant 0 : index
    %c0_7 = arith.constant 0 : index
    %43 = vector.load %arg3[%c0_6, %c0_7] : memref<120x384xbf16, #tpu.memory_space<vmem>>, vector<120x384xbf16>
    %cst_8 = arith.constant dense<0.000000e+00> : vector<128x384xf32>
    %44 = tpu.matmul %42, %43, %cst_8 {dimension_numbers = #tpu.dot_dimension_numbers<[1], [0], [0], [1], [0, 0, 1, 1], [], []>} : vector<128x120xbf16>, vector<120x384xbf16>, vector<128x384xf32> -> vector<128x384xf32>
    %45 = vector.shape_cast %44 : vector<128x384xf32> to vector<8x16x384xf32>
    %46 = vector.extract_strided_slice %45 {offsets = [0, 0, 0], sizes = [8, 8, 128], strides = [1, 1, 1]} : vector<8x16x384xf32> to vector<8x8x128xf32>
    %47 = vector.extract_strided_slice %45 {offsets = [0, 1, 128], sizes = [8, 8, 128], strides = [1, 1, 1]} : vector<8x16x384xf32> to vector<8x8x128xf32>
    %48 = arith.addf %46, %47 : vector<8x8x128xf32>
    %49 = vector.extract_strided_slice %45 {offsets = [0, 2, 256], sizes = [8, 8, 128], strides = [1, 1, 1]} : vector<8x16x384xf32> to vector<8x8x128xf32>
    %50 = arith.addf %48, %49 : vector<8x8x128xf32>
    %51 = vector.extract_strided_slice %50 {offsets = [0, 0, 0], sizes = [8, 1, 128], strides = [1, 1, 1]} : vector<8x8x128xf32> to vector<8x1x128xf32>
    %52 = vector.extract_strided_slice %50 {offsets = [0, 1, 0], sizes = [8, 1, 128], strides = [1, 1, 1]} : vector<8x8x128xf32> to vector<8x1x128xf32>
    %53 = arith.maximumf %51, %52 : vector<8x1x128xf32>
    %54 = vector.extract_strided_slice %50 {offsets = [0, 2, 0], sizes = [8, 1, 128], strides = [1, 1, 1]} : vector<8x8x128xf32> to vector<8x1x128xf32>
    %55 = vector.extract_strided_slice %50 {offsets = [0, 3, 0], sizes = [8, 1, 128], strides = [1, 1, 1]} : vector<8x8x128xf32> to vector<8x1x128xf32>
    %56 = arith.maximumf %54, %55 : vector<8x1x128xf32>
    %57 = vector.extract_strided_slice %50 {offsets = [0, 4, 0], sizes = [8, 1, 128], strides = [1, 1, 1]} : vector<8x8x128xf32> to vector<8x1x128xf32>
    %58 = vector.extract_strided_slice %50 {offsets = [0, 5, 0], sizes = [8, 1, 128], strides = [1, 1, 1]} : vector<8x8x128xf32> to vector<8x1x128xf32>
    %59 = arith.maximumf %57, %58 : vector<8x1x128xf32>
    %60 = vector.extract_strided_slice %50 {offsets = [0, 6, 0], sizes = [8, 1, 128], strides = [1, 1, 1]} : vector<8x8x128xf32> to vector<8x1x128xf32>
    %61 = vector.extract_strided_slice %50 {offsets = [0, 7, 0], sizes = [8, 1, 128], strides = [1, 1, 1]} : vector<8x8x128xf32> to vector<8x1x128xf32>
    %62 = arith.maximumf %60, %61 : vector<8x1x128xf32>
    %cst_9 = arith.constant 0.000000e+00 : f32
    %63 = vector.broadcast %cst_9 : f32 to vector<8x4x128xf32>
    %64 = tpu.concatenate %53, %56, %59, %62, %63 in 1 : vector<8x1x128xf32>, vector<8x1x128xf32>, vector<8x1x128xf32>, vector<8x1x128xf32>, vector<8x4x128xf32> -> vector<8x8x128xf32>
    %65 = vector.extract_strided_slice %64 {offsets = [0, 0, 0], sizes = [8, 8, 112], strides = [1, 1, 1]} : vector<8x8x128xf32> to vector<8x8x112xf32>
    %66 = vector.extract_strided_slice %64 {offsets = [0, 0, 16], sizes = [8, 8, 112], strides = [1, 1, 1]} : vector<8x8x128xf32> to vector<8x8x112xf32>
    %67 = arith.maximumf %65, %66 : vector<8x8x112xf32>
    %cst_10 = arith.constant 0.000000e+00 : f32
    %68 = vector.broadcast %cst_10 : f32 to vector<8x8x112xf32>
    %69 = arith.maximumf %67, %68 : vector<8x8x112xf32>
    %70 = vector.shape_cast %69 : vector<8x8x112xf32> to vector<64x112xf32>
    %71 = arith.truncf %70 : vector<64x112xf32> to vector<64x112xbf16>
    %c0_11 = arith.constant 0 : index
    %c0_12 = arith.constant 0 : index
    %c0_13 = arith.constant 0 : index
    %72 = vector.load %arg4[%c0_11, %c0_12, %c0_13] : memref<4x8x64xbf16, #tpu.memory_space<vmem>>, vector<1x8x64xbf16>
    %73 = vector.shape_cast %72 : vector<1x8x64xbf16> to vector<8x64xbf16>
    %cst_14 = arith.constant dense<0.000000e+00> : vector<8x112xf32>
    %74 = tpu.matmul %73, %71, %cst_14 {dimension_numbers = #tpu.dot_dimension_numbers<[1], [0], [0], [1], [0, 0, 1, 1], [], []>} : vector<8x64xbf16>, vector<64x112xbf16>, vector<8x112xf32> -> vector<8x112xf32>
    %c1 = arith.constant 1 : index
    %c0_15 = arith.constant 0 : index
    %c0_16 = arith.constant 0 : index
    %75 = vector.load %arg4[%c1, %c0_15, %c0_16] : memref<4x8x64xbf16, #tpu.memory_space<vmem>>, vector<1x8x64xbf16>
    %76 = vector.shape_cast %75 : vector<1x8x64xbf16> to vector<8x64xbf16>
    %cst_17 = arith.constant dense<0.000000e+00> : vector<8x112xf32>
    %77 = tpu.matmul %76, %71, %cst_17 {dimension_numbers = #tpu.dot_dimension_numbers<[1], [0], [0], [1], [0, 0, 1, 1], [], []>} : vector<8x64xbf16>, vector<64x112xbf16>, vector<8x112xf32> -> vector<8x112xf32>
    %c2 = arith.constant 2 : index
    %c0_18 = arith.constant 0 : index
    %c0_19 = arith.constant 0 : index
    %78 = vector.load %arg4[%c2, %c0_18, %c0_19] : memref<4x8x64xbf16, #tpu.memory_space<vmem>>, vector<1x8x64xbf16>
    %79 = vector.shape_cast %78 : vector<1x8x64xbf16> to vector<8x64xbf16>
    %cst_20 = arith.constant dense<0.000000e+00> : vector<8x112xf32>
    %80 = tpu.matmul %79, %71, %cst_20 {dimension_numbers = #tpu.dot_dimension_numbers<[1], [0], [0], [1], [0, 0, 1, 1], [], []>} : vector<8x64xbf16>, vector<64x112xbf16>, vector<8x112xf32> -> vector<8x112xf32>
    %c3 = arith.constant 3 : index
    %c0_21 = arith.constant 0 : index
    %c0_22 = arith.constant 0 : index
    %81 = vector.load %arg4[%c3, %c0_21, %c0_22] : memref<4x8x64xbf16, #tpu.memory_space<vmem>>, vector<1x8x64xbf16>
    %82 = vector.shape_cast %81 : vector<1x8x64xbf16> to vector<8x64xbf16>
    %cst_23 = arith.constant dense<0.000000e+00> : vector<8x112xf32>
    %83 = tpu.matmul %82, %71, %cst_23 {dimension_numbers = #tpu.dot_dimension_numbers<[1], [0], [0], [1], [0, 0, 1, 1], [], []>} : vector<8x64xbf16>, vector<64x112xbf16>, vector<8x112xf32> -> vector<8x112xf32>
    %84 = tpu.concatenate %74, %77, %80, %83 in 1 : vector<8x112xf32>, vector<8x112xf32>, vector<8x112xf32>, vector<8x112xf32> -> vector<8x448xf32>
    %85 = arith.truncf %84 : vector<8x448xf32> to vector<8x448xbf16>
    %c0_24 = arith.constant 0 : index
    %c0_25 = arith.constant 0 : index
    %86 = vector.load %arg5[%c0_24, %c0_25] : memref<448x32xbf16, #tpu.memory_space<vmem>>, vector<448x32xbf16>
    %cst_26 = arith.constant dense<0.000000e+00> : vector<8x32xf32>
    %87 = tpu.matmul %85, %86, %cst_26 {dimension_numbers = #tpu.dot_dimension_numbers<[1], [0], [0], [1], [0, 0, 1, 1], [], []>} : vector<8x448xbf16>, vector<448x32xbf16>, vector<8x32xf32> -> vector<8x32xf32>
    %c0_27 = arith.constant 0 : index
    %c0_28 = arith.constant 0 : index
    %88 = vector.load %arg6[%c0_27, %c0_28] : memref<1x32xf32, #tpu.memory_space<vmem>>, vector<1x32xf32>
    %89 = vector.broadcast %88 : vector<1x32xf32> to vector<8x32xf32>
    %90 = arith.addf %87, %89 : vector<8x32xf32>
    %cst_29 = arith.constant 0.000000e+00 : f32
    %91 = vector.broadcast %cst_29 : f32 to vector<8x32xf32>
    %92 = arith.maximumf %90, %91 : vector<8x32xf32>
    %93 = arith.truncf %92 : vector<8x32xf32> to vector<8x32xbf16>
    %c0_30 = arith.constant 0 : index
    %c0_31 = arith.constant 0 : index
    %94 = vector.load %arg7[%c0_30, %c0_31] : memref<32x4xbf16, #tpu.memory_space<vmem>>, vector<32x4xbf16>
    %cst_32 = arith.constant dense<0.000000e+00> : vector<8x4xf32>
    %95 = tpu.matmul %93, %94, %cst_32 {dimension_numbers = #tpu.dot_dimension_numbers<[1], [0], [0], [1], [0, 0, 1, 1], [], []>} : vector<8x32xbf16>, vector<32x4xbf16>, vector<8x4xf32> -> vector<8x4xf32>
    %c0_33 = arith.constant 0 : index
    %c0_34 = arith.constant 0 : index
    %96 = vector.load %arg8[%c0_33, %c0_34] : memref<1x4xf32, #tpu.memory_space<vmem>>, vector<1x4xf32>
    %97 = vector.broadcast %96 : vector<1x4xf32> to vector<8x4xf32>
    %98 = arith.addf %95, %97 : vector<8x4xf32>
    %cst_35 = arith.constant dense<0xFF800000> : vector<8xf32>
    %99 = vector.multi_reduction <maximumf>, %98, %cst_35 [1] : vector<8x4xf32> to vector<8xf32>
    %100 = vector.shape_cast %99 : vector<8xf32> to vector<8x1xf32>
    %101 = vector.broadcast %100 : vector<8x1xf32> to vector<8x4xf32>
    %102 = arith.subf %98, %101 : vector<8x4xf32>
    %103 = math.exp %102 : vector<8x4xf32>
    %cst_36 = arith.constant dense<0.000000e+00> : vector<8xf32>
    %104 = vector.multi_reduction <add>, %103, %cst_36 [1] : vector<8x4xf32> to vector<8xf32>
    %105 = vector.shape_cast %104 : vector<8xf32> to vector<8x1xf32>
    %106 = tpu.reciprocal %105 {approx = true} : vector<8x1xf32> -> vector<8x1xf32>
    %107 = arith.mulf %105, %106 : vector<8x1xf32>
    %cst_37 = arith.constant 2.000000e+00 : f32
    %108 = vector.broadcast %cst_37 : f32 to vector<8x1xf32>
    %109 = arith.subf %108, %107 : vector<8x1xf32>
    %110 = arith.mulf %106, %109 : vector<8x1xf32>
    %111 = vector.broadcast %110 : vector<8x1xf32> to vector<8x4xf32>
    %112 = arith.mulf %103, %111 : vector<8x4xf32>
    %c0_38 = arith.constant 0 : index
    %c0_39 = arith.constant 0 : index
    %113 = vector.load %arg9[%c0_38, %c0_39] : memref<8x4xf32, #tpu.memory_space<vmem>>, vector<8x4xf32>
    tpu.vector_store %arg9[%c0_38, %c0_39], %112 {strides = array<i32>} : memref<8x4xf32, #tpu.memory_space<vmem>>, vector<8x4xf32>,
    return
  }
  func.func @transform_0(%arg0: i32) -> (i32, i32) {
    %c0_i32 = arith.constant 0 : i32
    %c0_i32_0 = arith.constant 0 : i32
    return %arg0, %c0_i32 : i32, i32
  }
  func.func @transform_1(%arg0: i32) -> (i32, i32) {
    %c0_i32 = arith.constant 0 : i32
    %c0_i32_0 = arith.constant 0 : i32
    %c0_i32_1 = arith.constant 0 : i32
    return %c0_i32, %c0_i32_0 : i32, i32
  }
  func.func @transform_2(%arg0: i32) -> (i32, i32) {
    %c0_i32 = arith.constant 0 : i32
    %c0_i32_0 = arith.constant 0 : i32
    %c0_i32_1 = arith.constant 0 : i32
    return %c0_i32, %c0_i32_0 : i32, i32
  }
  func.func @transform_3(%arg0: i32) -> (i32, i32, i32) {
    %c0_i32 = arith.constant 0 : i32
    %c0_i32_0 = arith.constant 0 : i32
    %c0_i32_1 = arith.constant 0 : i32
    %c0_i32_2 = arith.constant 0 : i32
    return %c0_i32, %c0_i32_0, %c0_i32_1 : i32, i32, i32
  }
  func.func @transform_4(%arg0: i32) -> (i32, i32) {
    %c0_i32 = arith.constant 0 : i32
    %c0_i32_0 = arith.constant 0 : i32
    %c0_i32_1 = arith.constant 0 : i32
    return %c0_i32, %c0_i32_0 : i32, i32
  }
  func.func @transform_5(%arg0: i32) -> (i32, i32) {
    %c0_i32 = arith.constant 0 : i32
    %c0_i32_0 = arith.constant 0 : i32
    %c0_i32_1 = arith.constant 0 : i32
    return %c0_i32, %c0_i32_0 : i32, i32
  }
  func.func @transform_6(%arg0: i32) -> (i32, i32) {
    %c0_i32 = arith.constant 0 : i32
    %c0_i32_0 = arith.constant 0 : i32
    %c0_i32_1 = arith.constant 0 : i32
    return %c0_i32, %c0_i32_0 : i32, i32
  }
  func.func @transform_7(%arg0: i32) -> (i32, i32) {
    %c0_i32 = arith.constant 0 : i32
    %c0_i32_0 = arith.constant 0 : i32
    %c0_i32_1 = arith.constant 0 : i32
    return %c0_i32, %c0_i32_0 : i32, i32
  }
  func.func @transform_8(%arg0: i32) -> (i32, i32) {
    %c0_i32 = arith.constant 0 : i32
    %c0_i32_0 = arith.constant 0 : i32
    return %arg0, %c0_i32 : i32, i32
  }
}

</mosaic_0001>

<llo_original>
// kernel: _lambda_.1
$region0: #{_lambda_.1}
  #allocation0 [shape = 'u32[]', space=smem, size = 0x4, offset = 0x4, fixed_abs, tag = 'smem constant byte address 0x4 - core index']
  #allocation1 [shape = 'u32[72,128]{1,0:T(1,128)}', space=vmem, size = 0x9000, scoped, tag = 'internal scratch']
  %s0 = inlined_call_operand.vmem [shape: bf16[192,64], index: 0, kind: input, shape index: {}]
  %s1 = inlined_call_operand.vmem [shape: bf16[64,384], index: 1, kind: input, shape index: {}]
  %s2 = inlined_call_operand.vmem [shape: bf16[120,384], index: 2, kind: input, shape index: {}]
  %s3 = inlined_call_operand.hbm [shape: bf16[4,8,64], index: 3, kind: input, shape index: {}]
  %s4 = inlined_call_operand.vmem [shape: bf16[448,32], index: 4, kind: input, shape index: {}]
  %s5 = inlined_call_operand.vmem [shape: f32[1,32], index: 5, kind: input, shape index: {}]
  %s6 = inlined_call_operand.vmem [shape: bf16[32,4], index: 6, kind: input, shape index: {}]
  %s7 = inlined_call_operand.vmem [shape: f32[1,4], index: 7, kind: input, shape index: {}]
  %s8 = inlined_call_operand.vmem [shape: f32[8,4], index: 8, kind: output, shape index: {}]
  %s9 = sld [smem:[#allocation0]]
  $region46: #{_lambda_.1} parent=0
    _
  %s11 = ssub.s32 1, %s9
  %s12 = scalar_select 0, %s11, %s9
  $region1: #{_lambda_.1} parent=0
    #allocation2 [shape = 'u8[8192]{0}', space=vmem, size = 0x2000, scoped, tag = 'input window, operand 3, single buffered']
    #allocation3 [shape = 's32[1]{0}', space=sflag, size = 0x4, scoped, tag = 'scoped memory for _lambda_.1']
    %13 = vsyncpa [#allocation3], 0
    // Predicated region
    $region2: #{_lambda_.1} parent=1 // pred_check
      _
    $region3: #{_lambda_.1} parent=1 // pred_check_branch
      %15 = sbr.rel (0) target = $region5
    $region4: #{_lambda_.1} parent=1 // pred_region
      _
    $region5: #{_lambda_.1} parent=1 // pred_fallthru
      _
    // Predicated region
    $region6: #{_lambda_.1} parent=1 // pred_check
      _
    $region7: #{_lambda_.1} parent=1 // pred_check_branch
      %17 = sbr.rel (0) target = $region9
    $region8: #{_lambda_.1} parent=1 // pred_region
      _
    $region9: #{_lambda_.1} parent=1 // pred_fallthru
      _
    // Predicated region
    $region10: #{_lambda_.1} parent=1 // pred_check
      _
    $region11: #{_lambda_.1} parent=1 // pred_check_branch
      %19 = sbr.rel (0) target = $region13
    $region12: #{_lambda_.1} parent=1 // pred_region
      _
    $region13: #{_lambda_.1} parent=1 // pred_fallthru
      _
    // Predicated region
    $region14: #{_lambda_.1} parent=1 // pred_check
      _
    $region15: #{_lambda_.1} parent=1 // pred_check_branch
      %21 = sbr.rel (0) target = $region17
    $region16: #{_lambda_.1} parent=1 // pred_region
      %23 = vsyncadd [#allocation3], 0
      %s24 = sshll.u32 %s3, 4
      %s25 = int_to_ptr.hbm [resolvable:$true] %s24
      %s26 = sshll.u32 [#allocation2], 4
      %s27 = int_to_ptr.vmem [resolvable:$true] %s26
      %32 = dma.hbm_to_vmem [thread:$0]  %s25, 256, %s27, [#allocation3], 64, 64, 4
    $region17: #{_lambda_.1} parent=1 // pred_fallthru
      _
    // Predicated region
    $region18: #{_lambda_.1} parent=1 // pred_check
      _
    $region19: #{_lambda_.1} parent=1 // pred_check_branch
      %34 = sbr.rel (0) target = $region21
    $region20: #{_lambda_.1} parent=1 // pred_region
      _
    $region21: #{_lambda_.1} parent=1 // pred_fallthru
      _
    // Predicated region
    $region22: #{_lambda_.1} parent=1 // pred_check
      _
    $region23: #{_lambda_.1} parent=1 // pred_check_branch
      %36 = sbr.rel (0) target = $region25
    $region24: #{_lambda_.1} parent=1 // pred_region
      _
    $region25: #{_lambda_.1} parent=1 // pred_fallthru
      _
    // Predicated region
    $region26: #{_lambda_.1} parent=1 // pred_check
      _
    $region27: #{_lambda_.1} parent=1 // pred_check_branch
      %38 = sbr.rel (0) target = $region29
    $region28: #{_lambda_.1} parent=1 // pred_region
      _
    $region29: #{_lambda_.1} parent=1 // pred_fallthru
      _
    // Predicated region
    $region30: #{_lambda_.1} parent=1 // pred_check
      _
    $region31: #{_lambda_.1} parent=1 // pred_check_branch
      %40 = sbr.rel (0) target = $region33
    $region32: #{_lambda_.1} parent=1 // pred_region
      _
    $region33: #{_lambda_.1} parent=1 // pred_fallthru
      _
    // Predicated region
    $region34: #{_lambda_.1} parent=1 // pred_check
      _
    $region35: #{_lambda_.1} parent=1 // pred_check_branch
      %42 = sbr.rel (0) target = $region37
    $region36: #{_lambda_.1} parent=1 // pred_region
      %44 = dma.done [#allocation3], 256
    $region37: #{_lambda_.1} parent=1 // pred_fallthru
      _
    %v46 = vld [vmem:[%s0] sm:$0xf]
    %v47 = vld [vmem:[%s0 + $0x4] sm:$0xf]
    %v48 = vld [vmem:[%s0 + $0x8] sm:$0xf]
    %v49 = vld [vmem:[%s0 + $0xc] sm:$0xf]
    %v50 = vld [vmem:[%s0 + $0x10] sm:$0xf]
    %v51 = vld [vmem:[%s0 + $0x14] sm:$0xf]
    %v52 = vld [vmem:[%s0 + $0x18] sm:$0xf]
    %v53 = vld [vmem:[%s0 + $0x1c] sm:$0xf]
    %v54 = vld [vmem:[%s0 + $0x20] sm:$0xf]
    %v55 = vld [vmem:[%s0 + $0x24] sm:$0xf]
    %v56 = vld [vmem:[%s0 + $0x28] sm:$0xf]
    %v57 = vld [vmem:[%s0 + $0x2c] sm:$0xf]
    %v58 = vld [vmem:[%s0 + $0x30] sm:$0xf]
    %v59 = vld [vmem:[%s0 + $0x34] sm:$0xf]
    %v60 = vld [vmem:[%s0 + $0x38] sm:$0xf]
    %v61 = vld [vmem:[%s0 + $0x3c] sm:$0xf]
    %v62 = vld [vmem:[%s0 + $0x40] sm:$0xf]
    %v63 = vld [vmem:[%s0 + $0x44] sm:$0xf]
    %v64 = vld [vmem:[%s0 + $0x48] sm:$0xf]
    %v65 = vld [vmem:[%s0 + $0x4c] sm:$0xf]
    %v66 = vld [vmem:[%s0 + $0x50] sm:$0xf]
    %v67 = vld [vmem:[%s0 + $0x54] sm:$0xf]
    %v68 = vld [vmem:[%s0 + $0x58] sm:$0xf]
    %v69 = vld [vmem:[%s0 + $0x5c] sm:$0xf]
    %v70 = vld [vmem:[%s1] sm:$0xff]
    %v71 = vld [vmem:[%s1 + $0x8] sm:$0xf]
    %v72 = vld [vmem:[%s1 + $0xc] sm:$0xff]
    %v73 = vld [vmem:[%s1 + $0x14] sm:$0xf]
    %v74 = vld [vmem:[%s1 + $0x18] sm:$0xff]
    %v75 = vld [vmem:[%s1 + $0x20] sm:$0xf]
    %v76 = vld [vmem:[%s1 + $0x24] sm:$0xff]
    %v77 = vld [vmem:[%s1 + $0x2c] sm:$0xf]
    %v78 = vld [vmem:[%s1 + $0x30] sm:$0xff]
    %v79 = vld [vmem:[%s1 + $0x38] sm:$0xf]
    %v80 = vld [vmem:[%s1 + $0x3c] sm:$0xff]
    %v81 = vld [vmem:[%s1 + $0x44] sm:$0xf]
    %v82 = vld [vmem:[%s1 + $0x48] sm:$0xff]
    %v83 = vld [vmem:[%s1 + $0x50] sm:$0xf]
    %v84 = vld [vmem:[%s1 + $0x54] sm:$0xff]
    %v85 = vld [vmem:[%s1 + $0x5c] sm:$0xf]
    %v110 = vunpack.c.l.b16 %v46
    %v111 = vunpack.c.l.b16 %v47
    %v112 = vunpack.c.l.b16 %v48
    %v113 = vunpack.c.l.b16 %v49
    %v114 = vunpack.c.l.b16 %v50
    %v115 = vunpack.c.l.b16 %v51
    %v116 = vunpack.c.l.b16 %v52
    %v117 = vunpack.c.l.b16 %v53
    %v118 = vunpack.c.l.b16 %v54
    %v119 = vunpack.c.l.b16 %v55
    %v120 = vunpack.c.l.b16 %v56
    %v121 = vunpack.c.l.b16 %v57
    %v122 = vunpack.c.l.b16 %v58
    %v123 = vunpack.c.l.b16 %v59
    %v124 = vunpack.c.l.b16 %v60
    %v125 = vunpack.c.l.b16 %v61
    %v126 = vunpack.c.l.b16 %v62
    %v127 = vunpack.c.l.b16 %v63
    %v128 = vunpack.c.l.b16 %v64
    %v129 = vunpack.c.l.b16 %v65
    %v130 = vunpack.c.l.b16 %v66
    %v131 = vunpack.c.l.b16 %v67
    %v132 = vunpack.c.l.b16 %v68
    %v133 = vunpack.c.l.b16 %v69
    %v134 = vpack.c.b16 %v111, %v110
    %v135 = vpack.c.b16 %v113, %v112
    %v136 = vpack.c.b16 %v115, %v114
    %v137 = vpack.c.b16 %v117, %v116
    %v138 = vpack.c.b16 %v119, %v118
    %v139 = vpack.c.b16 %v121, %v120
    %v140 = vpack.c.b16 %v123, %v122
    %v141 = vpack.c.b16 %v125, %v124
    %v142 = vpack.c.b16 %v127, %v126
    %v143 = vpack.c.b16 %v129, %v128
    %v144 = vpack.c.b16 %v131, %v130
    %v145 = vpack.c.b16 %v133, %v132
    %v162 = vunpack.c.l.b16 %v70
    %v163 = vunpack.c.h.b16 %v70
    %v164 = vunpack.c.l.b16 %v71
    %v165 = vunpack.c.l.b16 %v72
    %v166 = vunpack.c.h.b16 %v72
    %v167 = vunpack.c.l.b16 %v73
    %v168 = vunpack.c.l.b16 %v74
    %v169 = vunpack.c.h.b16 %v74
    %v170 = vunpack.c.l.b16 %v75
    %v171 = vunpack.c.l.b16 %v76
    %v172 = vunpack.c.h.b16 %v76
    %v173 = vunpack.c.l.b16 %v77
    %v174 = vunpack.c.l.b16 %v78
    %v175 = vunpack.c.h.b16 %v78
    %v176 = vunpack.c.l.b16 %v79
    %v177 = vunpack.c.l.b16 %v80
    %v178 = vunpack.c.h.b16 %v80
    %v179 = vunpack.c.l.b16 %v81
    %v180 = vunpack.c.l.b16 %v82
    %v181 = vunpack.c.h.b16 %v82
    %v182 = vunpack.c.l.b16 %v83
    %v183 = vunpack.c.l.b16 %v84
    %v184 = vunpack.c.h.b16 %v84
    %v185 = vunpack.c.l.b16 %v85
    %v186 = vpack.c.b16 %v165, %v162
    %v187 = vpack.c.b16 %v166, %v163
    %v188 = vpack.c.b16 %v167, %v164
    %v189 = vpack.c.b16 %v171, %v168
    %v190 = vpack.c.b16 %v172, %v169
    %v191 = vpack.c.b16 %v173, %v170
    %v192 = vpack.c.b16 %v177, %v174
    %v193 = vpack.c.b16 %v178, %v175
    %v194 = vpack.c.b16 %v179, %v176
    %v195 = vpack.c.b16 %v183, %v180
    %v196 = vpack.c.b16 %v184, %v181
    %v197 = vpack.c.b16 %v185, %v182
    %vm210 = vcmask 523264
    %v212 = vsel %vm210, %v134, 0
    %v215 = vsel %vm210, %v135, 0
    %v218 = vsel %vm210, %v136, 0
    %v221 = vsel %vm210, %v137, 0
    %v224 = vsel %vm210, %v138, 0
    %v227 = vsel %vm210, %v139, 0
    %v230 = vsel %vm210, %v140, 0
    %v233 = vsel %vm210, %v141, 0
    %v236 = vsel %vm210, %v142, 0
    %v239 = vsel %vm210, %v143, 0
    %v242 = vsel %vm210, %v144, 0
    %v245 = vsel %vm210, %v145, 0
    %247 = vmatpush.bf16.msra.mxu0 0
    %248 = vmatpush.bf16.msra.mxu0 0
    %249 = vmatpush.bf16.msra.mxu0 0
    %250 = vmatpush.bf16.msra.mxu0 0
    %251 = vmatpush.bf16.msra.mxu0 %v195
    %252 = vmatpush.bf16.msra.mxu0 %v192
    %253 = vmatpush.bf16.msra.mxu0 %v189
    %254 = vmatpush.bf16.msra.mxu0 %v186
    %255 = vmatmul.bf16.gmra.mxu0 %v212
    %v256 = vpop.f32.mrf.mxu0
    %v257 = vadd.f32 0.0, %v256
    %v258 = vpop.f32.mrf.mxu0
    %v259 = vadd.f32 0.0, %v258
    %260 = vmatmul.bf16.gmra.mxu0 %v215
    %v261 = vpop.f32.mrf.mxu0
    %v262 = vpop.f32.mrf.mxu0
    %v263 = vadd.f32 0.0, %v262
    %264 = vmatmul.bf16.gmra.mxu0 %v218
    %v265 = vpop.f32.mrf.mxu0
    %v266 = vadd.f32 0.0, %v265
    %v267 = vpop.f32.mrf.mxu0
    %268 = vmatmul.bf16.gmra.mxu0 %v221
    %v269 = vpop.f32.mrf.mxu0
    %v270 = vadd.f32 0.0, %v269
    %v271 = vpop.f32.mrf.mxu0
    %v272 = vadd.f32 0.0, %v271
    %273 = vmatmul.bf16.gmra.mxu0 %v224
    %v274 = vpop.f32.mrf.mxu0
    %v275 = vpop.f32.mrf.mxu0
    %v276 = vadd.f32 0.0, %v275
    %277 = vmatmul.bf16.gmra.mxu0 %v227
    %v278 = vpop.f32.mrf.mxu0
    %v279 = vadd.f32 0.0, %v278
    %v280 = vpop.f32.mrf.mxu0
    %281 = vmatmul.bf16.gmra.mxu0 %v230
    %v282 = vpop.f32.mrf.mxu0
    %v283 = vadd.f32 0.0, %v282
    %v284 = vpop.f32.mrf.mxu0
    %v285 = vadd.f32 0.0, %v284
    %286 = vmatmul.bf16.gmra.mxu0 %v233
    %v287 = vpop.f32.mrf.mxu0
    %v288 = vpop.f32.mrf.mxu0
    %v289 = vadd.f32 0.0, %v288
    %290 = vmatmul.bf16.gmra.mxu0 %v236
    %v291 = vpop.f32.mrf.mxu0
    %v292 = vadd.f32 0.0, %v291
    %v293 = vpop.f32.mrf.mxu0
    %294 = vmatmul.bf16.gmra.mxu0 %v239
    %v295 = vpop.f32.mrf.mxu0
    %v296 = vadd.f32 0.0, %v295
    %v297 = vpop.f32.mrf.mxu0
    %v298 = vadd.f32 0.0, %v297
    %299 = vmatmul.bf16.gmra.mxu0 %v242
    %v300 = vpop.f32.mrf.mxu0
    %v301 = vpop.f32.mrf.mxu0
    %v302 = vadd.f32 0.0, %v301
    %303 = vmatmul.bf16.gmra.mxu0 %v245
    %v304 = vpop.f32.mrf.mxu0
    %v305 = vadd.f32 0.0, %v304
    %v306 = vpop.f32.mrf.mxu0
    %307 = vdwg.mxu0
    %308 = vmatpush.bf16.msra.mxu0 0
    %309 = vmatpush.bf16.msra.mxu0 0
    %310 = vmatpush.bf16.msra.mxu0 0
    %311 = vmatpush.bf16.msra.mxu0 0
    %312 = vmatpush.bf16.msra.mxu0 %v196
    %313 = vmatpush.bf16.msra.mxu0 %v193
    %314 = vmatpush.bf16.msra.mxu0 %v190
    %315 = vmatpush.bf16.msra.mxu0 %v187
    %316 = vmatmul.bf16.gmra.mxu0 %v212
    %v317 = vpop.f32.mrf.mxu0
    %v318 = vadd.f32 0.0, %v317
    %v319 = vpop.f32.mrf.mxu0
    %v320 = vadd.f32 0.0, %v319
    %321 = vmatmul.bf16.gmra.mxu0 %v215
    %v322 = vpop.f32.mrf.mxu0
    %v323 = vadd.f32 0.0, %v322
    %v324 = vpop.f32.mrf.mxu0
    %v325 = vadd.f32 0.0, %v324
    %326 = vmatmul.bf16.gmra.mxu0 %v218
    %v327 = vpop.f32.mrf.mxu0
    %v328 = vadd.f32 0.0, %v327
    %v329 = vpop.f32.mrf.mxu0
    %v330 = vadd.f32 0.0, %v329
    %331 = vmatmul.bf16.gmra.mxu0 %v221
    %v332 = vpop.f32.mrf.mxu0
    %v333 = vadd.f32 0.0, %v332
    %v334 = vpop.f32.mrf.mxu0
    %v335 = vadd.f32 0.0, %v334
    %336 = vmatmul.bf16.gmra.mxu0 %v224
    %v337 = vpop.f32.mrf.mxu0
    %v338 = vadd.f32 0.0, %v337
    %v339 = vpop.f32.mrf.mxu0
    %v340 = vadd.f32 0.0, %v339
    %341 = vmatmul.bf16.gmra.mxu0 %v227
    %v342 = vpop.f32.mrf.mxu0
    %v343 = vadd.f32 0.0, %v342
    %v344 = vpop.f32.mrf.mxu0
    %v345 = vadd.f32 0.0, %v344
    %346 = vmatmul.bf16.gmra.mxu0 %v230
    %v347 = vpop.f32.mrf.mxu0
    %v348 = vadd.f32 0.0, %v347
    %v349 = vpop.f32.mrf.mxu0
    %v350 = vadd.f32 0.0, %v349
    %351 = vmatmul.bf16.gmra.mxu0 %v233
    %v352 = vpop.f32.mrf.mxu0
    %v353 = vadd.f32 0.0, %v352
    %v354 = vpop.f32.mrf.mxu0
    %v355 = vadd.f32 0.0, %v354
    %356 = vmatmul.bf16.gmra.mxu0 %v236
    %v357 = vpop.f32.mrf.mxu0
    %v358 = vadd.f32 0.0, %v357
    %v359 = vpop.f32.mrf.mxu0
    %v360 = vadd.f32 0.0, %v359
    %361 = vmatmul.bf16.gmra.mxu0 %v239
    %v362 = vpop.f32.mrf.mxu0
    %v363 = vadd.f32 0.0, %v362
    %v364 = vpop.f32.mrf.mxu0
    %v365 = vadd.f32 0.0, %v364
    %366 = vmatmul.bf16.gmra.mxu0 %v242
    %v367 = vpop.f32.mrf.mxu0
    %v368 = vadd.f32 0.0, %v367
    %v369 = vpop.f32.mrf.mxu0
    %v370 = vadd.f32 0.0, %v369
    %371 = vmatmul.bf16.gmra.mxu0 %v245
    %v372 = vpop.f32.mrf.mxu0
    %v373 = vadd.f32 0.0, %v372
    %v374 = vpop.f32.mrf.mxu0
    %v375 = vadd.f32 0.0, %v374
    %376 = vdwg.mxu0
    %377 = vmatpush.bf16.msra.mxu0 0
    %378 = vmatpush.bf16.msra.mxu0 0
    %379 = vmatpush.bf16.msra.mxu0 0
    %380 = vmatpush.bf16.msra.mxu0 0
    %381 = vmatpush.bf16.msra.mxu0 %v197
    %382 = vmatpush.bf16.msra.mxu0 %v194
    %383 = vmatpush.bf16.msra.mxu0 %v191
    %384 = vmatpush.bf16.msra.mxu0 %v188
    %385 = vmatmul.bf16.gmra.mxu0 %v212
    %v386 = vpop.f32.mrf.mxu0
    %v387 = vadd.f32 0.0, %v386
    %v388 = vpop.f32.mrf.mxu0
    %v389 = vadd.f32 0.0, %v388
    %390 = vmatmul.bf16.gmra.mxu0 %v215
    %v391 = vpop.f32.mrf.mxu0
    %v392 = vadd.f32 0.0, %v391
    %v393 = vpop.f32.mrf.mxu0
    %v394 = vadd.f32 0.0, %v393
    %395 = vmatmul.bf16.gmra.mxu0 %v218
    %v396 = vpop.f32.mrf.mxu0
    %v397 = vadd.f32 0.0, %v396
    %v398 = vpop.f32.mrf.mxu0
    %v399 = vadd.f32 0.0, %v398
    %400 = vmatmul.bf16.gmra.mxu0 %v221
    %v401 = vpop.f32.mrf.mxu0
    %v402 = vadd.f32 0.0, %v401
    %v403 = vpop.f32.mrf.mxu0
    %v404 = vadd.f32 0.0, %v403
    %405 = vmatmul.bf16.gmra.mxu0 %v224
    %v406 = vpop.f32.mrf.mxu0
    %v407 = vadd.f32 0.0, %v406
    %v408 = vpop.f32.mrf.mxu0
    %v409 = vadd.f32 0.0, %v408
    %410 = vmatmul.bf16.gmra.mxu0 %v227
    %v411 = vpop.f32.mrf.mxu0
    %v412 = vadd.f32 0.0, %v411
    %v413 = vpop.f32.mrf.mxu0
    %v414 = vadd.f32 0.0, %v413
    %415 = vmatmul.bf16.gmra.mxu0 %v230
    %v416 = vpop.f32.mrf.mxu0
    %v417 = vadd.f32 0.0, %v416
    %v418 = vpop.f32.mrf.mxu0
    %v419 = vadd.f32 0.0, %v418
    %420 = vmatmul.bf16.gmra.mxu0 %v233
    %v421 = vpop.f32.mrf.mxu0
    %v422 = vadd.f32 0.0, %v421
    %v423 = vpop.f32.mrf.mxu0
    %v424 = vadd.f32 0.0, %v423
    %425 = vmatmul.bf16.gmra.mxu0 %v236
    %v426 = vpop.f32.mrf.mxu0
    %v427 = vadd.f32 0.0, %v426
    %v428 = vpop.f32.mrf.mxu0
    %v429 = vadd.f32 0.0, %v428
    %430 = vmatmul.bf16.gmra.mxu0 %v239
    %v431 = vpop.f32.mrf.mxu0
    %v432 = vadd.f32 0.0, %v431
    %v433 = vpop.f32.mrf.mxu0
    %v434 = vadd.f32 0.0, %v433
    %435 = vmatmul.bf16.gmra.mxu0 %v242
    %v436 = vpop.f32.mrf.mxu0
    %v437 = vadd.f32 0.0, %v436
    %v438 = vpop.f32.mrf.mxu0
    %v439 = vadd.f32 0.0, %v438
    %440 = vmatmul.bf16.gmra.mxu0 %v245
    %v441 = vpop.f32.mrf.mxu0
    %v442 = vadd.f32 0.0, %v441
    %v443 = vpop.f32.mrf.mxu0
    %v444 = vadd.f32 0.0, %v443
    %445 = vdwg.mxu0
    %vm470 = vcmask 1046528
    %v471 = vrot.slane %v318, 1
    %v472 = vrot.slane %v320, 1
    %v473 = vsel %vm470, %v471, %v472
    %v474 = vrot.slane %v323, 1
    %v475 = vsel %vm470, %v472, %v474
    %v476 = vrot.slane %v325, 1
    %v477 = vrot.slane %v328, 1
    %v478 = vsel %vm470, %v476, %v477
    %v479 = vrot.slane %v330, 1
    %v480 = vsel %vm470, %v477, %v479
    %v481 = vrot.slane %v333, 1
    %v482 = vrot.slane %v335, 1
    %v483 = vsel %vm470, %v481, %v482
    %v484 = vrot.slane %v338, 1
    %v485 = vsel %vm470, %v482, %v484
    %v486 = vrot.slane %v340, 1
    %v487 = vrot.slane %v343, 1
    %v488 = vsel %vm470, %v486, %v487
    %v489 = vrot.slane %v345, 1
    %v490 = vsel %vm470, %v487, %v489
    %v491 = vrot.slane %v348, 1
    %v492 = vrot.slane %v350, 1
    %v493 = vsel %vm470, %v491, %v492
    %v494 = vrot.slane %v353, 1
    %v495 = vsel %vm470, %v492, %v494
    %v496 = vrot.slane %v355, 1
    %v497 = vrot.slane %v358, 1
    %v498 = vsel %vm470, %v496, %v497
    %v499 = vrot.slane %v360, 1
    %v500 = vsel %vm470, %v497, %v499
    %v501 = vrot.slane %v363, 1
    %v502 = vrot.slane %v365, 1
    %v503 = vsel %vm470, %v501, %v502
    %v504 = vrot.slane %v368, 1
    %v505 = vsel %vm470, %v502, %v504
    %v506 = vrot.slane %v370, 1
    %v507 = vrot.slane %v373, 1
    %v508 = vsel %vm470, %v506, %v507
    %v509 = vrot.slane %v375, 1
    %v510 = vsel %vm470, %v507, %v509
    %v527 = vadd.f32 %v257, %v473
    %v528 = vadd.f32 %v259, %v475
    %v529 = vadd.f32 %v263, %v478
    %v530 = vadd.f32 %v266, %v480
    %v531 = vadd.f32 %v270, %v483
    %v532 = vadd.f32 %v272, %v485
    %v533 = vadd.f32 %v276, %v488
    %v534 = vadd.f32 %v279, %v490
    %v535 = vadd.f32 %v283, %v493
    %v536 = vadd.f32 %v285, %v495
    %v537 = vadd.f32 %v289, %v498
    %v538 = vadd.f32 %v292, %v500
    %v539 = vadd.f32 %v296, %v503
    %v540 = vadd.f32 %v298, %v505
    %v541 = vadd.f32 %v302, %v508
    %v542 = vadd.f32 %v305, %v510
    %vm567 = vcmask 1045504
    %v568 = vrot.slane %v387, 2
    %v569 = vrot.slane %v389, 2
    %v570 = vsel %vm567, %v568, %v569
    %v571 = vrot.slane %v392, 2
    %v572 = vsel %vm567, %v569, %v571
    %v573 = vrot.slane %v394, 2
    %v574 = vrot.slane %v397, 2
    %v575 = vsel %vm567, %v573, %v574
    %v576 = vrot.slane %v399, 2
    %v577 = vsel %vm567, %v574, %v576
    %v578 = vrot.slane %v402, 2
    %v579 = vrot.slane %v404, 2
    %v580 = vsel %vm567, %v578, %v579
    %v581 = vrot.slane %v407, 2
    %v582 = vsel %vm567, %v579, %v581
    %v583 = vrot.slane %v409, 2
    %v584 = vrot.slane %v412, 2
    %v585 = vsel %vm567, %v583, %v584
    %v586 = vrot.slane %v414, 2
    %v587 = vsel %vm567, %v584, %v586
    %v588 = vrot.slane %v417, 2
    %v589 = vrot.slane %v419, 2
    %v590 = vsel %vm567, %v588, %v589
    %v591 = vrot.slane %v422, 2
    %v592 = vsel %vm567, %v589, %v591
    %v593 = vrot.slane %v424, 2
    %v594 = vrot.slane %v427, 2
    %v595 = vsel %vm567, %v593, %v594
    %v596 = vrot.slane %v429, 2
    %v597 = vsel %vm567, %v594, %v596
    %v598 = vrot.slane %v432, 2
    %v599 = vrot.slane %v434, 2
    %v600 = vsel %vm567, %v598, %v599
    %v601 = vrot.slane %v437, 2
    %v602 = vsel %vm567, %v599, %v601
    %v603 = vrot.slane %v439, 2
    %v604 = vrot.slane %v442, 2
    %v605 = vsel %vm567, %v603, %v604
    %v606 = vrot.slane %v444, 2
    %v607 = vsel %vm567, %v604, %v606
    %v624 = vadd.f32 %v527, %v570
    %v625 = vadd.f32 %v528, %v572
    %v626 = vadd.f32 %v529, %v575
    %v627 = vadd.f32 %v530, %v577
    %v628 = vadd.f32 %v531, %v580
    %v629 = vadd.f32 %v532, %v582
    %v630 = vadd.f32 %v533, %v585
    %v631 = vadd.f32 %v534, %v587
    %v632 = vadd.f32 %v535, %v590
    %v633 = vadd.f32 %v536, %v592
    %v634 = vadd.f32 %v537, %v595
    %v635 = vadd.f32 %v538, %v597
    %v636 = vadd.f32 %v539, %v600
    %v637 = vadd.f32 %v540, %v602
    %v638 = vadd.f32 %v541, %v605
    %v639 = vadd.f32 %v542, %v607
    %v648 = vrot.slane %v624, 1
    %v649 = vrot.slane %v626, 1
    %v650 = vrot.slane %v628, 1
    %v651 = vrot.slane %v630, 1
    %v652 = vrot.slane %v632, 1
    %v653 = vrot.slane %v634, 1
    %v654 = vrot.slane %v636, 1
    %v655 = vrot.slane %v638, 1
    %v664 = vmax.f32 %v624, %v648
    %v665 = vmax.f32 %v626, %v649
    %v666 = vmax.f32 %v628, %v650
    %v667 = vmax.f32 %v630, %v651
    %v668 = vmax.f32 %v632, %v652
    %v669 = vmax.f32 %v634, %v653
    %v670 = vmax.f32 %v636, %v654
    %v671 = vmax.f32 %v638, %v655
    %v680 = vrot.slane %v625, 1
    %v681 = vrot.slane %v627, 1
    %v682 = vrot.slane %v629, 1
    %v683 = vrot.slane %v631, 1
    %v684 = vrot.slane %v633, 1
    %v685 = vrot.slane %v635, 1
    %v686 = vrot.slane %v637, 1
    %v687 = vrot.slane %v639, 1
    %v696 = vmax.f32 %v625, %v680
    %v697 = vmax.f32 %v627, %v681
    %v698 = vmax.f32 %v629, %v682
    %v699 = vmax.f32 %v631, %v683
    %v700 = vmax.f32 %v633, %v684
    %v701 = vmax.f32 %v635, %v685
    %v702 = vmax.f32 %v637, %v686
    %v703 = vmax.f32 %v639, %v687
    %v712 = vrot.slane %v664, 7
    %v713 = vrot.slane %v665, 7
    %v714 = vrot.slane %v666, 7
    %v715 = vrot.slane %v667, 7
    %v716 = vrot.slane %v668, 7
    %v717 = vrot.slane %v669, 7
    %v718 = vrot.slane %v670, 7
    %v719 = vrot.slane %v671, 7
    %v728 = vrot.slane %v664, 1
    %v729 = vrot.slane %v665, 1
    %v730 = vrot.slane %v666, 1
    %v731 = vrot.slane %v667, 1
    %v732 = vrot.slane %v668, 1
    %v733 = vrot.slane %v669, 1
    %v734 = vrot.slane %v670, 1
    %v735 = vrot.slane %v671, 1
    %v744 = vrot.slane %v664, 2
    %v745 = vrot.slane %v665, 2
    %v746 = vrot.slane %v666, 2
    %v747 = vrot.slane %v667, 2
    %v748 = vrot.slane %v668, 2
    %v749 = vrot.slane %v669, 2
    %v750 = vrot.slane %v670, 2
    %v751 = vrot.slane %v671, 2
    %v768 = vrot.slane %v696, 3
    %v769 = vrot.slane %v697, 3
    %v770 = vrot.slane %v698, 3
    %v771 = vrot.slane %v699, 3
    %v772 = vrot.slane %v700, 3
    %v773 = vrot.slane %v701, 3
    %v774 = vrot.slane %v702, 3
    %v775 = vrot.slane %v703, 3
    %v784 = vrot.slane %v696, 4
    %v785 = vrot.slane %v697, 4
    %v786 = vrot.slane %v698, 4
    %v787 = vrot.slane %v699, 4
    %v788 = vrot.slane %v700, 4
    %v789 = vrot.slane %v701, 4
    %v790 = vrot.slane %v702, 4
    %v791 = vrot.slane %v703, 4
    %v800 = vrot.slane %v696, 5
    %v801 = vrot.slane %v697, 5
    %v802 = vrot.slane %v698, 5
    %v803 = vrot.slane %v699, 5
    %v804 = vrot.slane %v700, 5
    %v805 = vrot.slane %v701, 5
    %v806 = vrot.slane %v702, 5
    %v807 = vrot.slane %v703, 5
    %v816 = vrot.slane %v696, 6
    %v817 = vrot.slane %v697, 6
    %v818 = vrot.slane %v698, 6
    %v819 = vrot.slane %v699, 6
    %v820 = vrot.slane %v700, 6
    %v821 = vrot.slane %v701, 6
    %v822 = vrot.slane %v702, 6
    %v823 = vrot.slane %v703, 6
    %vm832 = vcmask 1040384
    %v833 = vsel %vm832, 0.0, %v712
    %v834 = vsel %vm832, 0.0, %v713
    %v835 = vsel %vm832, 0.0, %v714
    %v836 = vsel %vm832, 0.0, %v715
    %v837 = vsel %vm832, 0.0, %v716
    %v838 = vsel %vm832, 0.0, %v717
    %v839 = vsel %vm832, 0.0, %v718
    %v840 = vsel %vm832, 0.0, %v719
    %vm841 = vcmask 1041408
    %v842 = vsel %vm841, %v833, %v664
    %v843 = vsel %vm841, %v834, %v665
    %v844 = vsel %vm841, %v835, %v666
    %v845 = vsel %vm841, %v836, %v667
    %v846 = vsel %vm841, %v837, %v668
    %v847 = vsel %vm841, %v838, %v669
    %v848 = vsel %vm841, %v839, %v670
    %v849 = vsel %vm841, %v840, %v671
    %vm850 = vcmask 1042432
    %v851 = vsel %vm850, %v842, %v728
    %v852 = vsel %vm850, %v843, %v729
    %v853 = vsel %vm850, %v844, %v730
    %v854 = vsel %vm850, %v845, %v731
    %v855 = vsel %vm850, %v846, %v732
    %v856 = vsel %vm850, %v847, %v733
    %v857 = vsel %vm850, %v848, %v734
    %v858 = vsel %vm850, %v849, %v735
    %vm859 = vcmask 1043456
    %v860 = vsel %vm859, %v851, %v744
    %v861 = vsel %vm859, %v852, %v745
    %v862 = vsel %vm859, %v853, %v746
    %v863 = vsel %vm859, %v854, %v747
    %v864 = vsel %vm859, %v855, %v748
    %v865 = vsel %vm859, %v856, %v749
    %v866 = vsel %vm859, %v857, %v750
    %v867 = vsel %vm859, %v858, %v751
    %vm868 = vcmask 1044480
    %v869 = vsel %vm868, %v860, %v768
    %v870 = vsel %vm868, %v861, %v769
    %v871 = vsel %vm868, %v862, %v770
    %v872 = vsel %vm868, %v863, %v771
    %v873 = vsel %vm868, %v864, %v772
    %v874 = vsel %vm868, %v865, %v773
    %v875 = vsel %vm868, %v866, %v774
    %v876 = vsel %vm868, %v867, %v775
    %v877 = vsel %vm567, %v869, %v784
    %v878 = vsel %vm567, %v870, %v785
    %v879 = vsel %vm567, %v871, %v786
    %v880 = vsel %vm567, %v872, %v787
    %v881 = vsel %vm567, %v873, %v788
    %v882 = vsel %vm567, %v874, %v789
    %v883 = vsel %vm567, %v875, %v790
    %v884 = vsel %vm567, %v876, %v791
    %v885 = vsel %vm470, %v877, %v800
    %v886 = vsel %vm470, %v878, %v801
    %v887 = vsel %vm470, %v879, %v802
    %v888 = vsel %vm470, %v880, %v803
    %v889 = vsel %vm470, %v881, %v804
    %v890 = vsel %vm470, %v882, %v805
    %v891 = vsel %vm470, %v883, %v806
    %v892 = vsel %vm470, %v884, %v807
    %v893 = vsel %vm832, %v816, 0.0
    %v894 = vsel %vm832, %v817, 0.0
    %v895 = vsel %vm832, %v818, 0.0
    %v896 = vsel %vm832, %v819, 0.0
    %v897 = vsel %vm832, %v820, 0.0
    %v898 = vsel %vm832, %v821, 0.0
    %v899 = vsel %vm832, %v822, 0.0
    %v900 = vsel %vm832, %v823, 0.0
    %917 = vrot.lane.b32.xlu0 %v885, 120
    %v918 = vpop.permute.xlu0 %917
    %919 = vrot.lane.b32.xlu0 %v893, 120
    %v920 = vpop.permute.xlu0 %919
    %921 = vrot.lane.b32.xlu0 %v886, 120
    %v922 = vpop.permute.xlu0 %921
    %923 = vrot.lane.b32.xlu0 %v894, 120
    %v924 = vpop.permute.xlu0 %923
    %925 = vrot.lane.b32.xlu0 %v887, 120
    %v926 = vpop.permute.xlu0 %925
    %927 = vrot.lane.b32.xlu0 %v895, 120
    %v928 = vpop.permute.xlu0 %927
    %929 = vrot.lane.b32.xlu0 %v888, 120
    %v930 = vpop.permute.xlu0 %929
    %931 = vrot.lane.b32.xlu0 %v896, 120
    %v932 = vpop.permute.xlu0 %931
    %933 = vrot.lane.b32.xlu0 %v889, 120
    %v934 = vpop.permute.xlu0 %933
    %935 = vrot.lane.b32.xlu0 %v897, 120
    %v936 = vpop.permute.xlu0 %935
    %937 = vrot.lane.b32.xlu0 %v890, 120
    %v938 = vpop.permute.xlu0 %937
    %939 = vrot.lane.b32.xlu0 %v898, 120
    %v940 = vpop.permute.xlu0 %939
    %941 = vrot.lane.b32.xlu0 %v891, 120
    %v942 = vpop.permute.xlu0 %941
    %943 = vrot.lane.b32.xlu0 %v899, 120
    %v944 = vpop.permute.xlu0 %943
    %945 = vrot.lane.b32.xlu0 %v892, 120
    %v946 = vpop.permute.xlu0 %945
    %947 = vrot.lane.b32.xlu0 %v900, 120
    %v948 = vpop.permute.xlu0 %947
    %v965 = vmax.f32 %v885, %v918
    %v966 = vmax.f32 %v893, %v920
    %v967 = vmax.f32 %v886, %v922
    %v968 = vmax.f32 %v894, %v924
    %v969 = vmax.f32 %v887, %v926
    %v970 = vmax.f32 %v895, %v928
    %v971 = vmax.f32 %v888, %v930
    %v972 = vmax.f32 %v896, %v932
    %v973 = vmax.f32 %v889, %v934
    %v974 = vmax.f32 %v897, %v936
    %v975 = vmax.f32 %v890, %v938
    %v976 = vmax.f32 %v898, %v940
    %v977 = vmax.f32 %v891, %v942
    %v978 = vmax.f32 %v899, %v944
    %v979 = vmax.f32 %v892, %v946
    %v980 = vmax.f32 %v900, %v948
    %v981 = vmax.f32 %v965, 0.0
    %v982 = vmax.f32 %v966, 0.0
    %v983 = vmax.f32 %v967, 0.0
    %v984 = vmax.f32 %v968, 0.0
    %v985 = vmax.f32 %v969, 0.0
    %v986 = vmax.f32 %v970, 0.0
    %v987 = vmax.f32 %v971, 0.0
    %v988 = vmax.f32 %v972, 0.0
    %v989 = vmax.f32 %v973, 0.0
    %v990 = vmax.f32 %v974, 0.0
    %v991 = vmax.f32 %v975, 0.0
    %v992 = vmax.f32 %v976, 0.0
    %v993 = vmax.f32 %v977, 0.0
    %v994 = vmax.f32 %v978, 0.0
    %v995 = vmax.f32 %v979, 0.0
    %v996 = vmax.f32 %v980, 0.0
    %v997 = vpack.c.bf16 %v982, %v981
    %v998 = vpack.c.bf16 %v984, %v983
    %v999 = vpack.c.bf16 %v986, %v985
    %v1000 = vpack.c.bf16 %v988, %v987
    %v1001 = vpack.c.bf16 %v990, %v989
    %v1002 = vpack.c.bf16 %v992, %v991
    %v1003 = vpack.c.bf16 %v994, %v993
    %v1004 = vpack.c.bf16 %v996, %v995
    %v1005 = vld [vmem:[%s2] sm:$0xff]
    %v1006 = vld [vmem:[%s2 + $0x8] sm:$0xf]
    %v1007 = vld [vmem:[%s2 + $0xc] sm:$0xff]
    %v1008 = vld [vmem:[%s2 + $0x14] sm:$0xf]
    %v1009 = vld [vmem:[%s2 + $0x18] sm:$0xff]
    %v1010 = vld [vmem:[%s2 + $0x20] sm:$0xf]
    %v1011 = vld [vmem:[%s2 + $0x24] sm:$0xff]
    %v1012 = vld [vmem:[%s2 + $0x2c] sm:$0xf]
    %v1013 = vld [vmem:[%s2 + $0x30] sm:$0xff]
    %v1014 = vld [vmem:[%s2 + $0x38] sm:$0xf]
    %v1015 = vld [vmem:[%s2 + $0x3c] sm:$0xff]
    %v1016 = vld [vmem:[%s2 + $0x44] sm:$0xf]
    %v1017 = vld [vmem:[%s2 + $0x48] sm:$0xff]
    %v1018 = vld [vmem:[%s2 + $0x50] sm:$0xf]
    %v1019 = vld [vmem:[%s2 + $0x54] sm:$0xff]
    %v1020 = vld [vmem:[%s2 + $0x5c] sm:$0xf]
    %v1021 = vld [vmem:[%s2 + $0x60] sm:$0xff]
    %v1022 = vld [vmem:[%s2 + $0x68] sm:$0xf]
    %v1023 = vld [vmem:[%s2 + $0x6c] sm:$0xff]
    %v1024 = vld [vmem:[%s2 + $0x74] sm:$0xf]
    %v1025 = vld [vmem:[%s2 + $0x78] sm:$0xff]
    %v1026 = vld [vmem:[%s2 + $0x80] sm:$0xf]
    %v1027 = vld [vmem:[%s2 + $0x84] sm:$0xff]
    %v1028 = vld [vmem:[%s2 + $0x8c] sm:$0xf]
    %v1029 = vld [vmem:[%s2 + $0x90] sm:$0xff]
    %v1030 = vld [vmem:[%s2 + $0x98] sm:$0xf]
    %v1031 = vld [vmem:[%s2 + $0x9c] sm:$0xff]
    %v1032 = vld [vmem:[%s2 + $0xa4] sm:$0xf]
    %v1033 = vld [vmem:[%s2 + $0xa8] sm:$0xff]
    %v1034 = vld [vmem:[%s2 + $0xb0] sm:$0xf]
    %v1065 = vunpack.c.l.b16 %v1005
    %v1066 = vunpack.c.h.b16 %v1005
    %v1067 = vunpack.c.l.b16 %v1006
    %v1068 = vunpack.c.l.b16 %v1007
    %v1069 = vunpack.c.h.b16 %v1007
    %v1070 = vunpack.c.l.b16 %v1008
    %v1071 = vunpack.c.l.b16 %v1009
    %v1072 = vunpack.c.h.b16 %v1009
    %v1073 = vunpack.c.l.b16 %v1010
    %v1074 = vunpack.c.l.b16 %v1011
    %v1075 = vunpack.c.h.b16 %v1011
    %v1076 = vunpack.c.l.b16 %v1012
    %v1077 = vunpack.c.l.b16 %v1013
    %v1078 = vunpack.c.h.b16 %v1013
    %v1079 = vunpack.c.l.b16 %v1014
    %v1080 = vunpack.c.l.b16 %v1015
    %v1081 = vunpack.c.h.b16 %v1015
    %v1082 = vunpack.c.l.b16 %v1016
    %v1083 = vunpack.c.l.b16 %v1017
    %v1084 = vunpack.c.h.b16 %v1017
    %v1085 = vunpack.c.l.b16 %v1018
    %v1086 = vunpack.c.l.b16 %v1019
    %v1087 = vunpack.c.h.b16 %v1019
    %v1088 = vunpack.c.l.b16 %v1020
    %v1089 = vunpack.c.l.b16 %v1021
    %v1090 = vunpack.c.h.b16 %v1021
    %v1091 = vunpack.c.l.b16 %v1022
    %v1092 = vunpack.c.l.b16 %v1023
    %v1093 = vunpack.c.h.b16 %v1023
    %v1094 = vunpack.c.l.b16 %v1024
    %v1095 = vunpack.c.l.b16 %v1025
    %v1096 = vunpack.c.h.b16 %v1025
    %v1097 = vunpack.c.l.b16 %v1026
    %v1098 = vunpack.c.l.b16 %v1027
    %v1099 = vunpack.c.h.b16 %v1027
    %v1100 = vunpack.c.l.b16 %v1028
    %v1101 = vunpack.c.l.b16 %v1029
    %v1102 = vunpack.c.h.b16 %v1029
    %v1103 = vunpack.c.l.b16 %v1030
    %v1104 = vunpack.c.l.b16 %v1031
    %v1105 = vunpack.c.h.b16 %v1031
    %v1106 = vunpack.c.l.b16 %v1032
    %v1107 = vunpack.c.l.b16 %v1033
    %v1108 = vunpack.c.h.b16 %v1033
    %v1109 = vunpack.c.l.b16 %v1034
    %v1110 = vpack.c.b16 %v1068, %v1065
    %v1111 = vpack.c.b16 %v1069, %v1066
    %v1112 = vpack.c.b16 %v1070, %v1067
    %v1113 = vpack.c.b16 %v1074, %v1071
    %v1114 = vpack.c.b16 %v1075, %v1072
    %v1115 = vpack.c.b16 %v1076, %v1073
    %v1116 = vpack.c.b16 %v1080, %v1077
    %v1117 = vpack.c.b16 %v1081, %v1078
    %v1118 = vpack.c.b16 %v1082, %v1079
    %v1119 = vpack.c.b16 %v1086, %v1083
    %v1120 = vpack.c.b16 %v1087, %v1084
    %v1121 = vpack.c.b16 %v1088, %v1085
    %v1122 = vpack.c.b16 %v1092, %v1089
    %v1123 = vpack.c.b16 %v1093, %v1090
    %v1124 = vpack.c.b16 %v1094, %v1091
    %v1125 = vpack.c.b16 %v1098, %v1095
    %v1126 = vpack.c.b16 %v1099, %v1096
    %v1127 = vpack.c.b16 %v1100, %v1097
    %v1128 = vpack.c.b16 %v1104, %v1101
    %v1129 = vpack.c.b16 %v1105, %v1102
    %v1130 = vpack.c.b16 %v1106, %v1103
    %v1131 = vpack.c.b16 %v1107, %v1107
    %v1132 = vpack.c.b16 %v1108, %v1108
    %v1133 = vpack.c.b16 %v1109, %v1109
    %vm1155 = vcmask 982016
    %v1157 = vsel %vm1155, %v997, 0
    %v1160 = vsel %vm1155, %v998, 0
    %v1163 = vsel %vm1155, %v999, 0
    %v1166 = vsel %vm1155, %v1000, 0
    %v1169 = vsel %vm1155, %v1001, 0
    %v1172 = vsel %vm1155, %v1002, 0
    %v1175 = vsel %vm1155, %v1003, 0
    %v1178 = vsel %vm1155, %v1004, 0
    %v1181 = vsel %vm859, %v1131, 0
    %v1184 = vsel %vm859, %v1132, 0
    %v1187 = vsel %vm859, %v1133, 0
    %1189 = vmatpush.bf16.msra.mxu0 %v1181
    %1190 = vmatpush.bf16.msra.mxu0 %v1128
    %1191 = vmatpush.bf16.msra.mxu0 %v1125
    %1192 = vmatpush.bf16.msra.mxu0 %v1122
    %1193 = vmatpush.bf16.msra.mxu0 %v1119
    %1194 = vmatpush.bf16.msra.mxu0 %v1116
    %1195 = vmatpush.bf16.msra.mxu0 %v1113
    %1196 = vmatpush.bf16.msra.mxu0 %v1110
    %1197 = vmatmul.bf16.gmra.mxu0 %v1157
    %v1198 = vpop.f32.mrf.mxu0
    %v1199 = vadd.f32 0.0, %v1198
    %v1200 = vpop.f32.mrf.mxu0
    %1201 = vmatmul.bf16.gmra.mxu0 %v1160
    %v1202 = vpop.f32.mrf.mxu0
    %v1203 = vadd.f32 0.0, %v1202
    %v1204 = vpop.f32.mrf.mxu0
    %1205 = vmatmul.bf16.gmra.mxu0 %v1163
    %v1206 = vpop.f32.mrf.mxu0
    %v1207 = vadd.f32 0.0, %v1206
    %v1208 = vpop.f32.mrf.mxu0
    %1209 = vmatmul.bf16.gmra.mxu0 %v1166
    %v1210 = vpop.f32.mrf.mxu0
    %v1211 = vadd.f32 0.0, %v1210
    %v1212 = vpop.f32.mrf.mxu0
    %1213 = vmatmul.bf16.gmra.mxu0 %v1169
    %v1214 = vpop.f32.mrf.mxu0
    %v1215 = vadd.f32 0.0, %v1214
    %v1216 = vpop.f32.mrf.mxu0
    %1217 = vmatmul.bf16.gmra.mxu0 %v1172
    %v1218 = vpop.f32.mrf.mxu0
    %v1219 = vadd.f32 0.0, %v1218
    %v1220 = vpop.f32.mrf.mxu0
    %1221 = vmatmul.bf16.gmra.mxu0 %v1175
    %v1222 = vpop.f32.mrf.mxu0
    %v1223 = vadd.f32 0.0, %v1222
    %v1224 = vpop.f32.mrf.mxu0
    %1225 = vmatmul.bf16.gmra.mxu0 %v1178
    %v1226 = vpop.f32.mrf.mxu0
    %v1227 = vadd.f32 0.0, %v1226
    %v1228 = vpop.f32.mrf.mxu0
    %1229 = vdwg.mxu0
    %1230 = vmatpush.bf16.msra.mxu0 %v1184
    %1231 = vmatpush.bf16.msra.mxu0 %v1129
    %1232 = vmatpush.bf16.msra.mxu0 %v1126
    %1233 = vmatpush.bf16.msra.mxu0 %v1123
    %1234 = vmatpush.bf16.msra.mxu0 %v1120
    %1235 = vmatpush.bf16.msra.mxu0 %v1117
    %1236 = vmatpush.bf16.msra.mxu0 %v1114
    %1237 = vmatpush.bf16.msra.mxu0 %v1111
    %1238 = vmatmul.bf16.gmra.mxu0 %v1157
    %v1239 = vpop.f32.mrf.mxu0
    %v1240 = vadd.f32 0.0, %v1239
    %v1241 = vpop.f32.mrf.mxu0
    %v1242 = vadd.f32 0.0, %v1241
    %1243 = vmatmul.bf16.gmra.mxu0 %v1160
    %v1244 = vpop.f32.mrf.mxu0
    %v1245 = vadd.f32 0.0, %v1244
    %v1246 = vpop.f32.mrf.mxu0
    %v1247 = vadd.f32 0.0, %v1246
    %1248 = vmatmul.bf16.gmra.mxu0 %v1163
    %v1249 = vpop.f32.mrf.mxu0
    %v1250 = vadd.f32 0.0, %v1249
    %v1251 = vpop.f32.mrf.mxu0
    %v1252 = vadd.f32 0.0, %v1251
    %1253 = vmatmul.bf16.gmra.mxu0 %v1166
    %v1254 = vpop.f32.mrf.mxu0
    %v1255 = vadd.f32 0.0, %v1254
    %v1256 = vpop.f32.mrf.mxu0
    %v1257 = vadd.f32 0.0, %v1256
    %1258 = vmatmul.bf16.gmra.mxu0 %v1169
    %v1259 = vpop.f32.mrf.mxu0
    %v1260 = vadd.f32 0.0, %v1259
    %v1261 = vpop.f32.mrf.mxu0
    %v1262 = vadd.f32 0.0, %v1261
    %1263 = vmatmul.bf16.gmra.mxu0 %v1172
    %v1264 = vpop.f32.mrf.mxu0
    %v1265 = vadd.f32 0.0, %v1264
    %v1266 = vpop.f32.mrf.mxu0
    %v1267 = vadd.f32 0.0, %v1266
    %1268 = vmatmul.bf16.gmra.mxu0 %v1175
    %v1269 = vpop.f32.mrf.mxu0
    %v1270 = vadd.f32 0.0, %v1269
    %v1271 = vpop.f32.mrf.mxu0
    %v1272 = vadd.f32 0.0, %v1271
    %1273 = vmatmul.bf16.gmra.mxu0 %v1178
    %v1274 = vpop.f32.mrf.mxu0
    %v1275 = vadd.f32 0.0, %v1274
    %v1276 = vpop.f32.mrf.mxu0
    %v1277 = vadd.f32 0.0, %v1276
    %1278 = vdwg.mxu0
    %1279 = vmatpush.bf16.msra.mxu0 %v1187
    %1280 = vmatpush.bf16.msra.mxu0 %v1130
    %1281 = vmatpush.bf16.msra.mxu0 %v1127
    %1282 = vmatpush.bf16.msra.mxu0 %v1124
    %1283 = vmatpush.bf16.msra.mxu0 %v1121
    %1284 = vmatpush.bf16.msra.mxu0 %v1118
    %1285 = vmatpush.bf16.msra.mxu0 %v1115
    %1286 = vmatpush.bf16.msra.mxu0 %v1112
    %1287 = vmatmul.bf16.gmra.mxu0 %v1157
    %v1288 = vpop.f32.mrf.mxu0
    %v1289 = vadd.f32 0.0, %v1288
    %v1290 = vpop.f32.mrf.mxu0
    %v1291 = vadd.f32 0.0, %v1290
    %1292 = vmatmul.bf16.gmra.mxu0 %v1160
    %v1293 = vpop.f32.mrf.mxu0
    %v1294 = vadd.f32 0.0, %v1293
    %v1295 = vpop.f32.mrf.mxu0
    %v1296 = vadd.f32 0.0, %v1295
    %1297 = vmatmul.bf16.gmra.mxu0 %v1163
    %v1298 = vpop.f32.mrf.mxu0
    %v1299 = vadd.f32 0.0, %v1298
    %v1300 = vpop.f32.mrf.mxu0
    %v1301 = vadd.f32 0.0, %v1300
    %1302 = vmatmul.bf16.gmra.mxu0 %v1166
    %v1303 = vpop.f32.mrf.mxu0
    %v1304 = vadd.f32 0.0, %v1303
    %v1305 = vpop.f32.mrf.mxu0
    %v1306 = vadd.f32 0.0, %v1305
    %1307 = vmatmul.bf16.gmra.mxu0 %v1169
    %v1308 = vpop.f32.mrf.mxu0
    %v1309 = vadd.f32 0.0, %v1308
    %v1310 = vpop.f32.mrf.mxu0
    %v1311 = vadd.f32 0.0, %v1310
    %1312 = vmatmul.bf16.gmra.mxu0 %v1172
    %v1313 = vpop.f32.mrf.mxu0
    %v1314 = vadd.f32 0.0, %v1313
    %v1315 = vpop.f32.mrf.mxu0
    %v1316 = vadd.f32 0.0, %v1315
    %1317 = vmatmul.bf16.gmra.mxu0 %v1175
    %v1318 = vpop.f32.mrf.mxu0
    %v1319 = vadd.f32 0.0, %v1318
    %v1320 = vpop.f32.mrf.mxu0
    %v1321 = vadd.f32 0.0, %v1320
    %1322 = vmatmul.bf16.gmra.mxu0 %v1178
    %v1323 = vpop.f32.mrf.mxu0
    %v1324 = vadd.f32 0.0, %v1323
    %v1325 = vpop.f32.mrf.mxu0
    %v1326 = vadd.f32 0.0, %v1325
    %1327 = vdwg.mxu0
    %v1344 = vrot.slane %v1240, 1
    %v1345 = vrot.slane %v1242, 1
    %v1346 = vsel %vm470, %v1344, %v1345
    %v1347 = vrot.slane %v1245, 1
    %v1348 = vrot.slane %v1247, 1
    %v1349 = vsel %vm470, %v1347, %v1348
    %v1350 = vrot.slane %v1250, 1
    %v1351 = vrot.slane %v1252, 1
    %v1352 = vsel %vm470, %v1350, %v1351
    %v1353 = vrot.slane %v1255, 1
    %v1354 = vrot.slane %v1257, 1
    %v1355 = vsel %vm470, %v1353, %v1354
    %v1356 = vrot.slane %v1260, 1
    %v1357 = vrot.slane %v1262, 1
    %v1358 = vsel %vm470, %v1356, %v1357
    %v1359 = vrot.slane %v1265, 1
    %v1360 = vrot.slane %v1267, 1
    %v1361 = vsel %vm470, %v1359, %v1360
    %v1362 = vrot.slane %v1270, 1
    %v1363 = vrot.slane %v1272, 1
    %v1364 = vsel %vm470, %v1362, %v1363
    %v1365 = vrot.slane %v1275, 1
    %v1366 = vrot.slane %v1277, 1
    %v1367 = vsel %vm470, %v1365, %v1366
    %v1376 = vadd.f32 %v1199, %v1346
    %v1377 = vadd.f32 %v1203, %v1349
    %v1378 = vadd.f32 %v1207, %v1352
    %v1379 = vadd.f32 %v1211, %v1355
    %v1380 = vadd.f32 %v1215, %v1358
    %v1381 = vadd.f32 %v1219, %v1361
    %v1382 = vadd.f32 %v1223, %v1364
    %v1383 = vadd.f32 %v1227, %v1367
    %v1400 = vrot.slane %v1289, 2
    %v1401 = vrot.slane %v1291, 2
    %v1402 = vsel %vm567, %v1400, %v1401
    %v1403 = vrot.slane %v1294, 2
    %v1404 = vrot.slane %v1296, 2
    %v1405 = vsel %vm567, %v1403, %v1404
    %v1406 = vrot.slane %v1299, 2
    %v1407 = vrot.slane %v1301, 2
    %v1408 = vsel %vm567, %v1406, %v1407
    %v1409 = vrot.slane %v1304, 2
    %v1410 = vrot.slane %v1306, 2
    %v1411 = vsel %vm567, %v1409, %v1410
    %v1412 = vrot.slane %v1309, 2
    %v1413 = vrot.slane %v1311, 2
    %v1414 = vsel %vm567, %v1412, %v1413
    %v1415 = vrot.slane %v1314, 2
    %v1416 = vrot.slane %v1316, 2
    %v1417 = vsel %vm567, %v1415, %v1416
    %v1418 = vrot.slane %v1319, 2
    %v1419 = vrot.slane %v1321, 2
    %v1420 = vsel %vm567, %v1418, %v1419
    %v1421 = vrot.slane %v1324, 2
    %v1422 = vrot.slane %v1326, 2
    %v1423 = vsel %vm567, %v1421, %v1422
    %v1432 = vadd.f32 %v1376, %v1402
    %v1433 = vadd.f32 %v1377, %v1405
    %v1434 = vadd.f32 %v1378, %v1408
    %v1435 = vadd.f32 %v1379, %v1411
    %v1436 = vadd.f32 %v1380, %v1414
    %v1437 = vadd.f32 %v1381, %v1417
    %v1438 = vadd.f32 %v1382, %v1420
    %v1439 = vadd.f32 %v1383, %v1423
    %v1448 = vrot.slane %v1432, 1
    %v1449 = vrot.slane %v1433, 1
    %v1450 = vrot.slane %v1434, 1
    %v1451 = vrot.slane %v1435, 1
    %v1452 = vrot.slane %v1436, 1
    %v1453 = vrot.slane %v1437, 1
    %v1454 = vrot.slane %v1438, 1
    %v1455 = vrot.slane %v1439, 1
    %v1464 = vmax.f32 %v1432, %v1448
    %v1465 = vmax.f32 %v1433, %v1449
    %v1466 = vmax.f32 %v1434, %v1450
    %v1467 = vmax.f32 %v1435, %v1451
    %v1468 = vmax.f32 %v1436, %v1452
    %v1469 = vmax.f32 %v1437, %v1453
    %v1470 = vmax.f32 %v1438, %v1454
    %v1471 = vmax.f32 %v1439, %v1455
    %v1480 = vrot.slane %v1464, 1
    %v1481 = vrot.slane %v1465, 1
    %v1482 = vrot.slane %v1466, 1
    %v1483 = vrot.slane %v1467, 1
    %v1484 = vrot.slane %v1468, 1
    %v1485 = vrot.slane %v1469, 1
    %v1486 = vrot.slane %v1470, 1
    %v1487 = vrot.slane %v1471, 1
    %v1496 = vrot.slane %v1464, 2
    %v1497 = vrot.slane %v1465, 2
    %v1498 = vrot.slane %v1466, 2
    %v1499 = vrot.slane %v1467, 2
    %v1500 = vrot.slane %v1468, 2
    %v1501 = vrot.slane %v1469, 2
    %v1502 = vrot.slane %v1470, 2
    %v1503 = vrot.slane %v1471, 2
    %v1512 = vrot.slane %v1464, 3
    %v1513 = vrot.slane %v1465, 3
    %v1514 = vrot.slane %v1466, 3
    %v1515 = vrot.slane %v1467, 3
    %v1516 = vrot.slane %v1468, 3
    %v1517 = vrot.slane %v1469, 3
    %v1518 = vrot.slane %v1470, 3
    %v1519 = vrot.slane %v1471, 3
    %v1528 = vsel %vm832, %v1464, %v1480
    %v1529 = vsel %vm832, %v1465, %v1481
    %v1530 = vsel %vm832, %v1466, %v1482
    %v1531 = vsel %vm832, %v1467, %v1483
    %v1532 = vsel %vm832, %v1468, %v1484
    %v1533 = vsel %vm832, %v1469, %v1485
    %v1534 = vsel %vm832, %v1470, %v1486
    %v1535 = vsel %vm832, %v1471, %v1487
    %v1536 = vsel %vm841, %v1528, %v1496
    %v1537 = vsel %vm841, %v1529, %v1497
    %v1538 = vsel %vm841, %v1530, %v1498
    %v1539 = vsel %vm841, %v1531, %v1499
    %v1540 = vsel %vm841, %v1532, %v1500
    %v1541 = vsel %vm841, %v1533, %v1501
    %v1542 = vsel %vm841, %v1534, %v1502
    %v1543 = vsel %vm841, %v1535, %v1503
    %v1544 = vsel %vm850, %v1536, %v1512
    %v1545 = vsel %vm850, %v1537, %v1513
    %v1546 = vsel %vm850, %v1538, %v1514
    %v1547 = vsel %vm850, %v1539, %v1515
    %v1548 = vsel %vm850, %v1540, %v1516
    %v1549 = vsel %vm850, %v1541, %v1517
    %v1550 = vsel %vm850, %v1542, %v1518
    %v1551 = vsel %vm850, %v1543, %v1519
    %v1552 = vsel %vm859, %v1544, 0.0
    %v1553 = vsel %vm859, %v1545, 0.0
    %v1554 = vsel %vm859, %v1546, 0.0
    %v1555 = vsel %vm859, %v1547, 0.0
    %v1556 = vsel %vm859, %v1548, 0.0
    %v1557 = vsel %vm859, %v1549, 0.0
    %v1558 = vsel %vm859, %v1550, 0.0
    %v1559 = vsel %vm859, %v1551, 0.0
    %1568 = vrot.lane.b32.xlu0 %v1552, 112
    %v1569 = vpop.permute.xlu0 %1568
    %1570 = vrot.lane.b32.xlu0 %v1553, 112
    %v1571 = vpop.permute.xlu0 %1570
    %1572 = vrot.lane.b32.xlu0 %v1554, 112
    %v1573 = vpop.permute.xlu0 %1572
    %1574 = vrot.lane.b32.xlu0 %v1555, 112
    %v1575 = vpop.permute.xlu0 %1574
    %1576 = vrot.lane.b32.xlu0 %v1556, 112
    %v1577 = vpop.permute.xlu0 %1576
    %1578 = vrot.lane.b32.xlu0 %v1557, 112
    %v1579 = vpop.permute.xlu0 %1578
    %1580 = vrot.lane.b32.xlu0 %v1558, 112
    %v1581 = vpop.permute.xlu0 %1580
    %1582 = vrot.lane.b32.xlu0 %v1559, 112
    %v1583 = vpop.permute.xlu0 %1582
    %v1592 = vmax.f32 %v1552, %v1569
    %v1593 = vmax.f32 %v1553, %v1571
    %v1594 = vmax.f32 %v1554, %v1573
    %v1595 = vmax.f32 %v1555, %v1575
    %v1596 = vmax.f32 %v1556, %v1577
    %v1597 = vmax.f32 %v1557, %v1579
    %v1598 = vmax.f32 %v1558, %v1581
    %v1599 = vmax.f32 %v1559, %v1583
    %v1600 = vmax.f32 %v1592, 0.0
    %v1601 = vmax.f32 %v1593, 0.0
    %v1602 = vmax.f32 %v1594, 0.0
    %v1603 = vmax.f32 %v1595, 0.0
    %v1604 = vmax.f32 %v1596, 0.0
    %v1605 = vmax.f32 %v1597, 0.0
    %v1606 = vmax.f32 %v1598, 0.0
    %v1607 = vmax.f32 %v1599, 0.0
    %v1608 = vpack.c.bf16 %v1601, %v1600
    %v1609 = vpack.c.bf16 %v1603, %v1602
    %v1610 = vpack.c.bf16 %v1605, %v1604
    %v1611 = vpack.c.bf16 %v1607, %v1606
    %v1612 = vld [vmem:[#allocation2] sm:$0xf]
    %v1614 = vsel %vm210, %v1612, 0
    %1616 = vmatpush.bf16.msra.mxu0 0
    %1617 = vmatpush.bf16.msra.mxu0 0
    %1618 = vmatpush.bf16.msra.mxu0 0
    %1619 = vmatpush.bf16.msra.mxu0 0
    %1620 = vmatpush.bf16.msra.mxu0 %v1611
    %1621 = vmatpush.bf16.msra.mxu0 %v1610
    %1622 = vmatpush.bf16.msra.mxu0 %v1609
    %1623 = vmatpush.bf16.msra.mxu0 %v1608
    %1624 = vmatmul.bf16.gmra.mxu0 %v1614
    %v1625 = vpop.f32.mrf.mxu0
    %v1626 = vadd.f32 0.0, %v1625
    %v1627 = vpop.f32.mrf.mxu0
    %1628 = vdwg.mxu0
    %s1629 = scalar_lea.vmem [#allocation2], 4
    %v1630 = vld [vmem:[%s1629] sm:$0xf]
    %v1632 = vsel %vm210, %v1630, 0
    %1634 = vmatpush.bf16.msra.mxu0 0
    %1635 = vmatpush.bf16.msra.mxu0 0
    %1636 = vmatpush.bf16.msra.mxu0 0
    %1637 = vmatpush.bf16.msra.mxu0 0
    %1638 = vmatpush.bf16.msra.mxu0 %v1611
    %1639 = vmatpush.bf16.msra.mxu0 %v1610
    %1640 = vmatpush.bf16.msra.mxu0 %v1609
    %1641 = vmatpush.bf16.msra.mxu0 %v1608
    %1642 = vmatmul.bf16.gmra.mxu0 %v1632
    %v1643 = vpop.f32.mrf.mxu0
    %v1644 = vadd.f32 0.0, %v1643
    %v1645 = vpop.f32.mrf.mxu0
    %1646 = vdwg.mxu0
    %s1647 = scalar_lea.vmem [#allocation2], 8
    %v1648 = vld [vmem:[%s1647] sm:$0xf]
    %v1650 = vsel %vm210, %v1648, 0
    %1652 = vmatpush.bf16.msra.mxu0 0
    %1653 = vmatpush.bf16.msra.mxu0 0
    %1654 = vmatpush.bf16.msra.mxu0 0
    %1655 = vmatpush.bf16.msra.mxu0 0
    %1656 = vmatpush.bf16.msra.mxu0 %v1611
    %1657 = vmatpush.bf16.msra.mxu0 %v1610
    %1658 = vmatpush.bf16.msra.mxu0 %v1609
    %1659 = vmatpush.bf16.msra.mxu0 %v1608
    %1660 = vmatmul.bf16.gmra.mxu0 %v1650
    %v1661 = vpop.f32.mrf.mxu0
    %v1662 = vadd.f32 0.0, %v1661
    %v1663 = vpop.f32.mrf.mxu0
    %1664 = vdwg.mxu0
    %s1665 = scalar_lea.vmem [#allocation2], 12
    %v1666 = vld [vmem:[%s1665] sm:$0xf]
    %v1668 = vsel %vm210, %v1666, 0
    %1670 = vmatpush.bf16.msra.mxu0 0
    %1671 = vmatpush.bf16.msra.mxu0 0
    %1672 = vmatpush.bf16.msra.mxu0 0
    %1673 = vmatpush.bf16.msra.mxu0 0
    %1674 = vmatpush.bf16.msra.mxu0 %v1611
    %1675 = vmatpush.bf16.msra.mxu0 %v1610
    %1676 = vmatpush.bf16.msra.mxu0 %v1609
    %1677 = vmatpush.bf16.msra.mxu0 %v1608
    %1678 = vmatmul.bf16.gmra.mxu0 %v1668
    %v1679 = vpop.f32.mrf.mxu0
    %v1680 = vadd.f32 0.0, %v1679
    %v1681 = vpop.f32.mrf.mxu0
    %1682 = vdwg.mxu0
    %1684 = vrot.lane.b32.xlu0 %v1644, 112
    %v1685 = vpop.permute.xlu0 %1684
    %1688 = vrot.lane.b32.xlu0 %v1662, 96
    %v1689 = vpop.permute.xlu0 %1688
    %1692 = vrot.lane.b32.xlu0 %v1680, 80
    %v1693 = vpop.permute.xlu0 %1692
    %vm1695 = vcmask 916480
    %v1696 = vsel %vm1695, %v1626, %v1685
    %vm1697 = vcmask 785408
    %v1698 = vsel %vm1697, %v1685, %v1689
    %vm1699 = vcmask 654336
    %v1700 = vsel %vm1699, %v1689, %v1693
    %v1701 = vpack.c.bf16 %v1696, %v1696
    %v1702 = vpack.c.bf16 %v1698, %v1698
    %v1703 = vpack.c.bf16 %v1700, %v1700
    %v1704 = vpack.c.bf16 %v1693, %v1693
    %v1705 = vld [vmem:[%s4] sm:$0xf]
    %v1706 = vld [vmem:[%s4 + $0x4] sm:$0xf]
    %v1707 = vld [vmem:[%s4 + $0x8] sm:$0xf]
    %v1708 = vld [vmem:[%s4 + $0xc] sm:$0xf]
    %v1709 = vld [vmem:[%s4 + $0x10] sm:$0xf]
    %v1710 = vld [vmem:[%s4 + $0x14] sm:$0xf]
    %v1711 = vld [vmem:[%s4 + $0x18] sm:$0xf]
    %v1712 = vld [vmem:[%s4 + $0x1c] sm:$0xf]
    %v1713 = vld [vmem:[%s4 + $0x20] sm:$0xf]
    %v1714 = vld [vmem:[%s4 + $0x24] sm:$0xf]
    %v1715 = vld [vmem:[%s4 + $0x28] sm:$0xf]
    %v1716 = vld [vmem:[%s4 + $0x2c] sm:$0xf]
    %v1717 = vld [vmem:[%s4 + $0x30] sm:$0xf]
    %v1718 = vld [vmem:[%s4 + $0x34] sm:$0xf]
    %v1719 = vld [vmem:[%s4 + $0x38] sm:$0xf]
    %v1720 = vld [vmem:[%s4 + $0x3c] sm:$0xf]
    %v1721 = vld [vmem:[%s4 + $0x40] sm:$0xf]
    %v1722 = vld [vmem:[%s4 + $0x44] sm:$0xf]
    %v1723 = vld [vmem:[%s4 + $0x48] sm:$0xf]
    %v1724 = vld [vmem:[%s4 + $0x4c] sm:$0xf]
    %v1725 = vld [vmem:[%s4 + $0x50] sm:$0xf]
    %v1726 = vld [vmem:[%s4 + $0x54] sm:$0xf]
    %v1727 = vld [vmem:[%s4 + $0x58] sm:$0xf]
    %v1728 = vld [vmem:[%s4 + $0x5c] sm:$0xf]
    %v1729 = vld [vmem:[%s4 + $0x60] sm:$0xf]
    %v1730 = vld [vmem:[%s4 + $0x64] sm:$0xf]
    %v1731 = vld [vmem:[%s4 + $0x68] sm:$0xf]
    %v1732 = vld [vmem:[%s4 + $0x6c] sm:$0xf]
    %v1733 = vld [vmem:[%s4 + $0x70] sm:$0xf]
    %v1734 = vld [vmem:[%s4 + $0x74] sm:$0xf]
    %v1735 = vld [vmem:[%s4 + $0x78] sm:$0xf]
    %v1736 = vld [vmem:[%s4 + $0x7c] sm:$0xf]
    %v1737 = vld [vmem:[%s4 + $0x80] sm:$0xf]
    %v1738 = vld [vmem:[%s4 + $0x84] sm:$0xf]
    %v1739 = vld [vmem:[%s4 + $0x88] sm:$0xf]
    %v1740 = vld [vmem:[%s4 + $0x8c] sm:$0xf]
    %v1741 = vld [vmem:[%s4 + $0x90] sm:$0xf]
    %v1742 = vld [vmem:[%s4 + $0x94] sm:$0xf]
    %v1743 = vld [vmem:[%s4 + $0x98] sm:$0xf]
    %v1744 = vld [vmem:[%s4 + $0x9c] sm:$0xf]
    %v1745 = vld [vmem:[%s4 + $0xa0] sm:$0xf]
    %v1746 = vld [vmem:[%s4 + $0xa4] sm:$0xf]
    %v1747 = vld [vmem:[%s4 + $0xa8] sm:$0xf]
    %v1748 = vld [vmem:[%s4 + $0xac] sm:$0xf]
    %v1749 = vld [vmem:[%s4 + $0xb0] sm:$0xf]
    %v1750 = vld [vmem:[%s4 + $0xb4] sm:$0xf]
    %v1751 = vld [vmem:[%s4 + $0xb8] sm:$0xf]
    %v1752 = vld [vmem:[%s4 + $0xbc] sm:$0xf]
    %v1753 = vld [vmem:[%s4 + $0xc0] sm:$0xf]
    %v1754 = vld [vmem:[%s4 + $0xc4] sm:$0xf]
    %v1755 = vld [vmem:[%s4 + $0xc8] sm:$0xf]
    %v1756 = vld [vmem:[%s4 + $0xcc] sm:$0xf]
    %v1757 = vld [vmem:[%s4 + $0xd0] sm:$0xf]
    %v1758 = vld [vmem:[%s4 + $0xd4] sm:$0xf]
    %v1759 = vld [vmem:[%s4 + $0xd8] sm:$0xf]
    %v1760 = vld [vmem:[%s4 + $0xdc] sm:$0xf]
    %v1761 = vld [vmem:[%s5] sm:$0x1]
    %v1763 = vperm.slane %v1761, 0
    %v1821 = vunpack.c.l.b16 %v1705
    %v1822 = vunpack.c.l.b16 %v1706
    %v1823 = vunpack.c.l.b16 %v1707
    %v1824 = vunpack.c.l.b16 %v1708
    %v1825 = vunpack.c.l.b16 %v1709
    %v1826 = vunpack.c.l.b16 %v1710
    %v1827 = vunpack.c.l.b16 %v1711
    %v1828 = vunpack.c.l.b16 %v1712
    %v1829 = vunpack.c.l.b16 %v1713
    %v1830 = vunpack.c.l.b16 %v1714
    %v1831 = vunpack.c.l.b16 %v1715
    %v1832 = vunpack.c.l.b16 %v1716
    %v1833 = vunpack.c.l.b16 %v1717
    %v1834 = vunpack.c.l.b16 %v1718
    %v1835 = vunpack.c.l.b16 %v1719
    %v1836 = vunpack.c.l.b16 %v1720
    %v1837 = vunpack.c.l.b16 %v1721
    %v1838 = vunpack.c.l.b16 %v1722
    %v1839 = vunpack.c.l.b16 %v1723
    %v1840 = vunpack.c.l.b16 %v1724
    %v1841 = vunpack.c.l.b16 %v1725
    %v1842 = vunpack.c.l.b16 %v1726
    %v1843 = vunpack.c.l.b16 %v1727
    %v1844 = vunpack.c.l.b16 %v1728
    %v1845 = vunpack.c.l.b16 %v1729
    %v1846 = vunpack.c.l.b16 %v1730
    %v1847 = vunpack.c.l.b16 %v1731
    %v1848 = vunpack.c.l.b16 %v1732
    %v1849 = vunpack.c.l.b16 %v1733
    %v1850 = vunpack.c.l.b16 %v1734
    %v1851 = vunpack.c.l.b16 %v1735
    %v1852 = vunpack.c.l.b16 %v1736
    %v1853 = vunpack.c.l.b16 %v1737
    %v1854 = vunpack.c.l.b16 %v1738
    %v1855 = vunpack.c.l.b16 %v1739
    %v1856 = vunpack.c.l.b16 %v1740
    %v1857 = vunpack.c.l.b16 %v1741
    %v1858 = vunpack.c.l.b16 %v1742
    %v1859 = vunpack.c.l.b16 %v1743
    %v1860 = vunpack.c.l.b16 %v1744
    %v1861 = vunpack.c.l.b16 %v1745
    %v1862 = vunpack.c.l.b16 %v1746
    %v1863 = vunpack.c.l.b16 %v1747
    %v1864 = vunpack.c.l.b16 %v1748
    %v1865 = vunpack.c.l.b16 %v1749
    %v1866 = vunpack.c.l.b16 %v1750
    %v1867 = vunpack.c.l.b16 %v1751
    %v1868 = vunpack.c.l.b16 %v1752
    %v1869 = vunpack.c.l.b16 %v1753
    %v1870 = vunpack.c.l.b16 %v1754
    %v1871 = vunpack.c.l.b16 %v1755
    %v1872 = vunpack.c.l.b16 %v1756
    %v1873 = vunpack.c.l.b16 %v1757
    %v1874 = vunpack.c.l.b16 %v1758
    %v1875 = vunpack.c.l.b16 %v1759
    %v1876 = vunpack.c.l.b16 %v1760
    %v1877 = vpack.c.b16 %v1822, %v1821
    %v1878 = vpack.c.b16 %v1824, %v1823
    %v1879 = vpack.c.b16 %v1826, %v1825
    %v1880 = vpack.c.b16 %v1828, %v1827
    %v1881 = vpack.c.b16 %v1830, %v1829
    %v1882 = vpack.c.b16 %v1832, %v1831
    %v1883 = vpack.c.b16 %v1834, %v1833
    %v1884 = vpack.c.b16 %v1836, %v1835
    %v1885 = vpack.c.b16 %v1838, %v1837
    %v1886 = vpack.c.b16 %v1840, %v1839
    %v1887 = vpack.c.b16 %v1842, %v1841
    %v1888 = vpack.c.b16 %v1844, %v1843
    %v1889 = vpack.c.b16 %v1846, %v1845
    %v1890 = vpack.c.b16 %v1848, %v1847
    %v1891 = vpack.c.b16 %v1850, %v1849
    %v1892 = vpack.c.b16 %v1852, %v1851
    %v1893 = vpack.c.b16 %v1854, %v1853
    %v1894 = vpack.c.b16 %v1856, %v1855
    %v1895 = vpack.c.b16 %v1858, %v1857
    %v1896 = vpack.c.b16 %v1860, %v1859
    %v1897 = vpack.c.b16 %v1862, %v1861
    %v1898 = vpack.c.b16 %v1864, %v1863
    %v1899 = vpack.c.b16 %v1866, %v1865
    %v1900 = vpack.c.b16 %v1868, %v1867
    %v1901 = vpack.c.b16 %v1870, %v1869
    %v1902 = vpack.c.b16 %v1872, %v1871
    %v1903 = vpack.c.b16 %v1874, %v1873
    %v1904 = vpack.c.b16 %v1876, %v1875
    %v1934 = vsel %vm210, %v1704, 0
    %1936 = vmatpush.bf16.msra.mxu0 %v1884
    %1937 = vmatpush.bf16.msra.mxu0 %v1883
    %1938 = vmatpush.bf16.msra.mxu0 %v1882
    %1939 = vmatpush.bf16.msra.mxu0 %v1881
    %1940 = vmatpush.bf16.msra.mxu0 %v1880
    %1941 = vmatpush.bf16.msra.mxu0 %v1879
    %1942 = vmatpush.bf16.msra.mxu0 %v1878
    %1943 = vmatpush.bf16.msra.mxu0 %v1877
    %1944 = vmatmul.bf16.gmra.mxu0 %v1701
    %v1945 = vpop.f32.mrf.mxu0
    %v1946 = vadd.f32 %v1763, %v1945
    %v1947 = vpop.f32.mrf.mxu0
    %1948 = vdwg.mxu0
    %1949 = vmatpush.bf16.msra.mxu0 %v1892
    %1950 = vmatpush.bf16.msra.mxu0 %v1891
    %1951 = vmatpush.bf16.msra.mxu0 %v1890
    %1952 = vmatpush.bf16.msra.mxu0 %v1889
    %1953 = vmatpush.bf16.msra.mxu0 %v1888
    %1954 = vmatpush.bf16.msra.mxu0 %v1887
    %1955 = vmatpush.bf16.msra.mxu0 %v1886
    %1956 = vmatpush.bf16.msra.mxu0 %v1885
    %1957 = vmatmul.bf16.gmra.mxu0 %v1702
    %v1958 = vpop.f32.mrf.mxu0
    %v1959 = vadd.f32 %v1946, %v1958
    %v1960 = vpop.f32.mrf.mxu0
    %1961 = vdwg.mxu0
    %1962 = vmatpush.bf16.msra.mxu0 %v1900
    %1963 = vmatpush.bf16.msra.mxu0 %v1899
    %1964 = vmatpush.bf16.msra.mxu0 %v1898
    %1965 = vmatpush.bf16.msra.mxu0 %v1897
    %1966 = vmatpush.bf16.msra.mxu0 %v1896
    %1967 = vmatpush.bf16.msra.mxu0 %v1895
    %1968 = vmatpush.bf16.msra.mxu0 %v1894
    %1969 = vmatpush.bf16.msra.mxu0 %v1893
    %1970 = vmatmul.bf16.gmra.mxu0 %v1703
    %v1971 = vpop.f32.mrf.mxu0
    %v1972 = vadd.f32 %v1959, %v1971
    %v1973 = vpop.f32.mrf.mxu0
    %1974 = vdwg.mxu0
    %1975 = vmatpush.bf16.msra.mxu0 0
    %1976 = vmatpush.bf16.msra.mxu0 0
    %1977 = vmatpush.bf16.msra.mxu0 0
    %1978 = vmatpush.bf16.msra.mxu0 0
    %1979 = vmatpush.bf16.msra.mxu0 %v1904
    %1980 = vmatpush.bf16.msra.mxu0 %v1903
    %1981 = vmatpush.bf16.msra.mxu0 %v1902
    %1982 = vmatpush.bf16.msra.mxu0 %v1901
    %1983 = vmatmul.bf16.gmra.mxu0 %v1934
    %v1984 = vpop.f32.mrf.mxu0
    %v1985 = vadd.f32 %v1972, %v1984
    %v1986 = vpop.f32.mrf.mxu0
    %1987 = vdwg.mxu0
    %v1988 = vmax.f32 %v1985, 0.0
    %v1989 = vpack.c.bf16 %v1988, %v1988
    %v1990 = vld [vmem:[%s6] sm:$0xf]
    %v1991 = vld [vmem:[%s6 + $0x4] sm:$0xf]
    %v1992 = vld [vmem:[%s6 + $0x8] sm:$0xf]
    %v1993 = vld [vmem:[%s6 + $0xc] sm:$0xf]
    %v1994 = vld [vmem:[%s7] sm:$0x1]
    %v1996 = vperm.slane %v1994, 0
    %v2002 = vunpack.c.l.b16 %v1990
    %v2003 = vunpack.c.l.b16 %v1991
    %v2004 = vunpack.c.l.b16 %v1992
    %v2005 = vunpack.c.l.b16 %v1993
    %v2006 = vpack.c.b16 %v2003, %v2002
    %v2007 = vpack.c.b16 %v2005, %v2004
    %vm2010 = vcmask 261120
    %v2012 = vsel %vm2010, %v1989, 0
    %2014 = vmatpush.bf16.msra.mxu0 0
    %2015 = vmatpush.bf16.msra.mxu0 0
    %2016 = vmatpush.bf16.msra.mxu0 0
    %2017 = vmatpush.bf16.msra.mxu0 0
    %2018 = vmatpush.bf16.msra.mxu0 0
    %2019 = vmatpush.bf16.msra.mxu0 0
    %2020 = vmatpush.bf16.msra.mxu0 %v2007
    %2021 = vmatpush.bf16.msra.mxu0 %v2006
    %2022 = vmatmul.bf16.gmra.mxu0 %v2012
    %v2023 = vpop.f32.mrf.mxu0
    %v2024 = vadd.f32 %v1996, %v2023
    %v2025 = vpop.f32.mrf.mxu0
    %2026 = vdwg.mxu0
    %vm2027 = vcmask 31744
    %v2028 = vsel %vm2027, %v2024, -inf
    %2029 = vmax.xlane.f32.xlu0 %v2028
    %v2030 = vpop.xlane.xlu0 %2029
    %v2031 = vsub.f32 %v2024, %v2030
    %v2032 = vmul.f32 %v2031, 1.442695
    %v2033 = vpow.pop %v2032
    %v2034 = vsel %vm2027, %v2033, 0.0
    %2035 = vadd.xlane.f32.xlu0 %v2034
    %v2036 = vpop.xlane.xlu0 %2035
    %v2037 = vrcp.pop %v2036
    %v2038 = vmul.f32 %v2036, %v2037
    %v2039 = vsub.f32 2.0, %v2038
    %v2040 = vmul.f32 %v2037, %v2039
    %v2041 = vmul.f32 %v2033, %v2040
    %2042 = vst.msk [vmem:[%s8] sm:$0xff] %vm2027, %v2041
    // Predicated region
    $region38: #{_lambda_.1} parent=1 // pred_check
      _
    $region39: #{_lambda_.1} parent=1 // pred_check_branch
      %2044 = sbr.rel (0) target = $region41
    $region40: #{_lambda_.1} parent=1 // pred_region
      _
    $region41: #{_lambda_.1} parent=1 // pred_fallthru
      _
    // Predicated region
    $region42: #{_lambda_.1} parent=1 // pred_check
      _
    $region43: #{_lambda_.1} parent=1 // pred_check_branch
      %2046 = sbr.rel (0) target = $region45
    $region44: #{_lambda_.1} parent=1 // pred_region
      _
    $region45: #{_lambda_.1} parent=1 // pred_fallthru
      _
    %2047 = vsyncpa [#allocation3], 1

</llo_original>
